<compile_context>
chip_gen: v7x
topology: tpu7x:2x2x1
jax: 0.10.0
libtpu: 0.0.40
codegen_flags: <defaults>
</compile_context>

<pallas_src>
import jax
import jax.numpy as jnp
from jax.experimental import pallas as pl
from jax.experimental.pallas import tpu as pltpu

_LANES = 128


def _round_up(x, m):
    return ((x + m - 1) // m) * m


def _fid_backbone_kernel(x_ref, w_ref, b_ref, sel_ref, o_ref):
    # x_ref  : (TN*HW, Cin)       f32  block of TN images, NHWC-flattened
    # w_ref  : (Cin, Cfeat_pad)   bf16 zero-padded 1x1-conv weight
    # b_ref  : (1, Cfeat_pad)     f32  lane-dense bias row
    # sel_ref: (TN, TN*HW)        f32  block-diagonal averaging selector (1/HW)
    # o_ref  : (TN, Cfeat_pad)    f32  pooled features (one dense output tile)
    xb = x_ref[...].astype(jnp.bfloat16)          # in-kernel cast: x read once from HBM as f32
    z = jnp.dot(xb, w_ref[...], preferred_element_type=jnp.float32)   # (TN*HW, Cf)
    h = jnp.maximum(z + b_ref[...], 0.0)          # bias (sublane bcast) + ReLU on VPU
    # Global average pool as a second MXU matmul -> one unmasked (TN, Cf) store.
    o_ref[...] = jnp.dot(sel_ref[...], h, preferred_element_type=jnp.float32)


def fidnet_forward(x_nchw, w, b, *, tn=None):
    """Pallas implementation of FIDNet.forward with a synthetic fid_incv3.

    Returns [N, Cfeat] float32, matching y = fid_incv3(x)[0][:, :, 0, 0].
    """
    N, Cin, H, W = x_nchw.shape
    cin_w, cfeat = w.shape
    assert cin_w == Cin
    HW = H * W

    if tn is None:
        # Two balanced grid steps (v7x: both TensorCores busy; v5e/v6e: only
        # one extra ~0.35us step).  tn must be a multiple of 8 (output tile).
        tn = max(8, _round_up(pl.cdiv(N, 2), 8))
    cfeat_pad = _round_up(cfeat, _LANES)
    n_pad = _round_up(N, tn)

    # One cheap wrapper transpose/reshape to NHWC so Cfeat ends on lanes
    # after the in-kernel matmul.  x stays f32 (cast to bf16 in-kernel).
    x = jnp.transpose(x_nchw, (0, 2, 3, 1)).reshape(N, HW, Cin)
    if n_pad != N:
        x = jnp.pad(x, ((0, n_pad - N), (0, 0), (0, 0)))
    x = x.reshape(n_pad * HW, Cin).astype(jnp.float32)

    # Lane-padded weight (padded output channels compute exact zeros).
    w_pad = jnp.zeros((Cin, cfeat_pad), jnp.bfloat16).at[:, :cfeat].set(
        w.astype(jnp.bfloat16))
    # Lane-dense bias row.
    b_row = jnp.zeros((1, cfeat_pad), jnp.float32).at[0, :cfeat].set(
        b.astype(jnp.float32))
    # Block-diagonal averaging selector: sel[n, n*HW + j] = 1/HW.
    row_of_col = jnp.repeat(jnp.arange(tn, dtype=jnp.int32), HW)        # (tn*HW,)
    sel = jnp.where(jnp.arange(tn, dtype=jnp.int32)[:, None] == row_of_col[None, :],
                    jnp.float32(1.0 / HW), jnp.float32(0.0))            # (tn, tn*HW)

    n_blocks = n_pad // tn
    grid = (n_blocks,)

    cost = pl.CostEstimate(
        flops=n_blocks * (2 * tn * HW * Cin * cfeat_pad        # conv matmul
                          + 2 * tn * HW * cfeat_pad            # bias + ReLU
                          + 2 * tn * tn * HW * cfeat_pad),     # pooling matmul
        transcendentals=0,
        bytes_accessed=(x.size * 4 + w_pad.size * 2 + b_row.size * 4
                        + sel.size * 4 + n_pad * cfeat_pad * 4),
    )

    out = pl.pallas_call(
        _fid_backbone_kernel,
        out_shape=jax.ShapeDtypeStruct((n_pad, cfeat_pad), jnp.float32),
        grid_spec=pltpu.PrefetchScalarGridSpec(
            num_scalar_prefetch=0,
            grid=grid,
            in_specs=[
                pl.BlockSpec((tn * HW, Cin), lambda i: (i, 0)),        # x slab
                pl.BlockSpec((Cin, cfeat_pad), lambda i: (0, 0)),      # weight
                pl.BlockSpec((1, cfeat_pad), lambda i: (0, 0)),        # bias row
                pl.BlockSpec((tn, tn * HW), lambda i: (0, 0)),         # selector
            ],
            out_specs=pl.BlockSpec((tn, cfeat_pad), lambda i: (i, 0)),
        ),
        compiler_params=pltpu.CompilerParams(
            dimension_semantics=("parallel",),
            vmem_limit_bytes=32 * 1024 * 1024,
        ),
        cost_estimate=cost,
    )(x, w_pad, b_row, sel)

    # FIDNet: y = y[0]; y = y[:, :, 0, 0]  ->  [N, Cfeat]
    return out[:N, :cfeat]


def _reference(x_nchw, w, b):
    # Pure-JAX reference of the same synthetic backbone (bf16-rounded inputs,
    # f32 accumulation) + FIDNet squeeze.
    N, Cin, H, W = x_nchw.shape
    xb = x_nchw.astype(jnp.bfloat16).astype(jnp.float32)
    wb = w.astype(jnp.bfloat16).astype(jnp.float32)
    x2 = jnp.transpose(xb, (0, 2, 3, 1)).reshape(N, H * W, Cin)
    z = jnp.einsum("npc,cf->npf", x2, wb) + b.astype(jnp.float32)[None, None, :]
    h = jnp.maximum(z, 0.0)
    return jnp.mean(h, axis=1)


if __name__ == "__main__":
    key = jax.random.PRNGKey(0)
    kx, kw, kb = jax.random.split(key, 3)

    # Small NCHW input consistent with the module; N chosen so the batched
    # grid has 2 balanced parallel steps (TN = 8 images per step).
    N, Cin, H, W = 16, 4, 16, 16
    Cfeat = 32                       # stand-in for InceptionV3's pooled feature dim

    x = jax.random.normal(kx, (N, Cin, H, W), dtype=jnp.float32)
    w = jax.random.normal(kw, (Cin, Cfeat), dtype=jnp.float32) * 0.1
    b = jax.random.normal(kb, (Cfeat,), dtype=jnp.float32) * 0.1

    y = fidnet_forward(x, w, b)
    y = jax.block_until_ready(y)

    y_ref = _reference(x, w, b)
    assert y.shape == (N, Cfeat), y.shape
    # Tolerance covers possible reduced-precision passes of the f32 pooling
    # matmul on the MXU (generation-dependent), well above observed error.
    assert jnp.allclose(y, y_ref, atol=2e-3, rtol=2e-3), "mismatch vs reference"

    print("KERNEL_OK")
</pallas_src>

<mosaic_0001>
module attributes {stable_mosaic.version = 11 : i64} {
  func.func @_fid_backbone_kernel(%arg0: i32, %arg1: memref<2048x4xf32, #tpu.memory_space<vmem>>, %arg2: memref<4x128xbf16, #tpu.memory_space<vmem>>, %arg3: memref<1x128xf32, #tpu.memory_space<vmem>>, %arg4: memref<8x2048xf32, #tpu.memory_space<vmem>>, %arg5: memref<8x128xf32, #tpu.memory_space<vmem>>) attributes {dimension_semantics = [#tpu.dimension_semantics<parallel>], iteration_bounds = array<i64: 2>, scalar_prefetch = 0 : i64, scratch_operands = 0 : i64, tpu.core_type = #tpu.core_type<tc>, window_params = [{transform_indices = @transform_0, window_bounds = array<i64: 2048, 4>}, {pipeline_mode = #tpu.pipeline_mode<synchronous>, transform_indices = @transform_1, window_bounds = array<i64: 4, 128>}, {pipeline_mode = #tpu.pipeline_mode<synchronous>, transform_indices = @transform_2, window_bounds = array<i64: 1, 128>}, {pipeline_mode = #tpu.pipeline_mode<synchronous>, transform_indices = @transform_3, window_bounds = array<i64: 8, 2048>}, {transform_indices = @transform_4, window_bounds = array<i64: 8, 128>}]} {
    %c0 = arith.constant 0 : index
    %c0_0 = arith.constant 0 : index
    %0 = vector.load %arg1[%c0, %c0_0] : memref<2048x4xf32, #tpu.memory_space<vmem>>, vector<2048x4xf32>
    %1 = arith.truncf %0 : vector<2048x4xf32> to vector<2048x4xbf16>
    %c0_1 = arith.constant 0 : index
    %c0_2 = arith.constant 0 : index
    %2 = vector.load %arg2[%c0_1, %c0_2] : memref<4x128xbf16, #tpu.memory_space<vmem>>, vector<4x128xbf16>
    %cst = arith.constant dense<0.000000e+00> : vector<2048x128xf32>
    %3 = tpu.matmul %1, %2, %cst {dimension_numbers = #tpu.dot_dimension_numbers<[1], [0], [0], [1], [0, 0, 1, 1], [], []>} : vector<2048x4xbf16>, vector<4x128xbf16>, vector<2048x128xf32> -> vector<2048x128xf32>
    %c0_3 = arith.constant 0 : index
    %c0_4 = arith.constant 0 : index
    %4 = vector.load %arg3[%c0_3, %c0_4] : memref<1x128xf32, #tpu.memory_space<vmem>>, vector<1x128xf32>
    %5 = vector.broadcast %4 : vector<1x128xf32> to vector<2048x128xf32>
    %6 = arith.addf %3, %5 : vector<2048x128xf32>
    %cst_5 = arith.constant 0.000000e+00 : f32
    %7 = vector.broadcast %cst_5 : f32 to vector<2048x128xf32>
    %8 = arith.maximumf %6, %7 : vector<2048x128xf32>
    %c0_6 = arith.constant 0 : index
    %c0_7 = arith.constant 0 : index
    %9 = vector.load %arg4[%c0_6, %c0_7] : memref<8x2048xf32, #tpu.memory_space<vmem>>, vector<8x2048xf32>
    %cst_8 = arith.constant dense<0.000000e+00> : vector<8x128xf32>
    %10 = tpu.matmul %9, %8, %cst_8 {dimension_numbers = #tpu.dot_dimension_numbers<[1], [0], [0], [1], [0, 0, 1, 1], [], []>} : vector<8x2048xf32>, vector<2048x128xf32>, vector<8x128xf32> -> vector<8x128xf32>
    %c0_9 = arith.constant 0 : index
    %c0_10 = arith.constant 0 : index
    %11 = vector.load %arg5[%c0_9, %c0_10] : memref<8x128xf32, #tpu.memory_space<vmem>>, vector<8x128xf32>
    tpu.vector_store %arg5[%c0_9, %c0_10], %10 {strides = array<i32>} : memref<8x128xf32, #tpu.memory_space<vmem>>, vector<8x128xf32>,
    return
  }
  func.func @transform_0(%arg0: i32) -> (i32, i32) {
    %c0_i32 = arith.constant 0 : i32
    %c0_i32_0 = arith.constant 0 : i32
    return %arg0, %c0_i32 : i32, i32
  }
  func.func @transform_1(%arg0: i32) -> (i32, i32) {
    %c0_i32 = arith.constant 0 : i32
    %c0_i32_0 = arith.constant 0 : i32
    %c0_i32_1 = arith.constant 0 : i32
    return %c0_i32, %c0_i32_0 : i32, i32
  }
  func.func @transform_2(%arg0: i32) -> (i32, i32) {
    %c0_i32 = arith.constant 0 : i32
    %c0_i32_0 = arith.constant 0 : i32
    %c0_i32_1 = arith.constant 0 : i32
    return %c0_i32, %c0_i32_0 : i32, i32
  }
  func.func @transform_3(%arg0: i32) -> (i32, i32) {
    %c0_i32 = arith.constant 0 : i32
    %c0_i32_0 = arith.constant 0 : i32
    %c0_i32_1 = arith.constant 0 : i32
    return %c0_i32, %c0_i32_0 : i32, i32
  }
  func.func @transform_4(%arg0: i32) -> (i32, i32) {
    %c0_i32 = arith.constant 0 : i32
    %c0_i32_0 = arith.constant 0 : i32
    return %arg0, %c0_i32 : i32, i32
  }
}

</mosaic_0001>

<llo_original>
// kernel: tpu_custom_call.1
$region0: #{tpu_custom_call.1}
  #allocation0 [shape = 'u32[]', space=smem, size = 0x4, offset = 0x4, fixed_abs, tag = 'smem constant byte address 0x4 - core index']
  #allocation1 [shape = 'u32[144,128]{1,0:T(1,128)}', space=vmem, size = 0x12000, scoped, tag = 'internal scratch']
  %s0 = inlined_call_operand.vmem [shape: f32[4096,4], index: 0, kind: input, shape index: {}]
  %s1 = inlined_call_operand.vmem [shape: bf16[4,128], index: 1, kind: input, shape index: {}]
  %s2 = inlined_call_operand.vmem [shape: f32[1,128], index: 2, kind: input, shape index: {}]
  %s3 = inlined_call_operand.vmem [shape: f32[8,2048], index: 3, kind: input, shape index: {}]
  %s4 = inlined_call_operand.hbm [shape: f32[16,128], index: 4, kind: output, shape index: {}]
  %s5 = sld [smem:[#allocation0]]
  $region49: #{tpu_custom_call.1} parent=0
    _
  %s7 = ssub.s32 1, %s5
  %s8 = scalar_select 0, %s7, %s5
  $region1: #{tpu_custom_call.1} parent=0
    #allocation2 [shape = 'u8[8192]{0}', space=vmem, size = 0x2000, scoped, tag = 'output window, operand 0']
    #allocation3 [shape = 's32[2]{0}', space=sflag, size = 0x8, scoped, tag = 'scoped memory for tpu_custom_call.1']
    %9 = vsyncpa [#allocation3], 0
    %s10 = scalar_lea.sflag [#allocation3], 1
    %11 = vsyncpa %s10, 0
    loop: start=0, step=1, limit=4
    $region2: #{tpu_custom_call.1} parent=1 // loop_pre_header
      _
    $region3: #{tpu_custom_call.1} parent=1 // loop_header
      %s13 = sphi 0, %s17
      %p14 = scmp.ge.s32.totalorder %s13, 4
      %s23 = sphi 0, %s25
      %s26 = sphi 0, %s23
      %s27 = sphi 0, %s26
      %s43 = sphi 0, %s27
      %s47 = sphi 0, %s47
      %s49 = sphi 0, %s47
      %s50 = sphi 0, %s49
      %s64 = sphi 0, %s50
      %s68 = sphi 0, %s68
      %s70 = sphi 0, %s68
      %s71 = sphi 0, %s70
      %s85 = sphi 0, %s71
      %s89 = sphi 0, %s89
      %s91 = sphi 0, %s89
      %s92 = sphi 0, %s91
      %s106 = sphi 0, %s92
      %s112 = sphi 0, %s114
      %s115 = sphi 0, %s112
      %s116 = sphi 0, %s115
      %s132 = sphi 0, %s116
    $region4: #{tpu_custom_call.1} parent=1 // loop_header_branch
      %16 = sbr.rel (%p14) target = $region8
    $region5: #{tpu_custom_call.1} parent=1 // loop_body
      %s18 = ssub.s32 %s13, 1
      %s19 = ssub.s32 %s13, 2
      %s20 = sadd.s32 %s13, 1
      %s21 = ssub.s32 %s13, %s20
      %p22 = scmp.eq.s32.totalorder %s21, 0
      %s24 = sadd.s32 %s23, 1
      %s25 = scalar_select %p22, %s23, %s24
      %p28 = pneg %p22
      %p29 = scmp.eq.s32.totalorder %s13, 1
      %p30 = por %p28, %p29
      %p31 = scmp.ne.s32.totalorder %s23, %s26
      %p32 = scmp.eq.s32.totalorder %s13, 0
      %p33 = por %p31, %p32
      %p34 = scmp.ne.s32.totalorder %s23, %s26
      %p35 = scmp.eq.s32.totalorder %s18, 1
      %p36 = por %p34, %p35
      %p37 = scmp.ne.s32.totalorder %s26, %s27
      %p38 = scmp.eq.s32.totalorder %s18, 0
      %p39 = por %p37, %p38
      %p40 = scmp.ne.s32.totalorder %s26, %s27
      %p41 = scmp.eq.s32.totalorder %s19, 1
      %p42 = por %p40, %p41
      %p44 = scmp.ne.s32.totalorder %s27, %s43
      %p45 = scmp.eq.s32.totalorder %s19, 0
      %p46 = por %p44, %p45
      %s48 = sadd.s32 %s47, 1
      %p51 = scmp.eq.s32.totalorder %s13, 1
      %p52 = scmp.ne.s32.totalorder %s47, %s49
      %p53 = scmp.eq.s32.totalorder %s13, 0
      %p54 = por %p52, %p53
      %p55 = scmp.ne.s32.totalorder %s47, %s49
      %p56 = scmp.eq.s32.totalorder %s18, 1
      %p57 = por %p55, %p56
      %p58 = scmp.ne.s32.totalorder %s49, %s50
      %p59 = scmp.eq.s32.totalorder %s18, 0
      %p60 = por %p58, %p59
      %p61 = scmp.ne.s32.totalorder %s49, %s50
      %p62 = scmp.eq.s32.totalorder %s19, 1
      %p63 = por %p61, %p62
      %p65 = scmp.ne.s32.totalorder %s50, %s64
      %p66 = scmp.eq.s32.totalorder %s19, 0
      %p67 = por %p65, %p66
      %s69 = sadd.s32 %s68, 1
      %p72 = scmp.eq.s32.totalorder %s13, 1
      %p73 = scmp.ne.s32.totalorder %s68, %s70
      %p74 = scmp.eq.s32.totalorder %s13, 0
      %p75 = por %p73, %p74
      %p76 = scmp.ne.s32.totalorder %s68, %s70
      %p77 = scmp.eq.s32.totalorder %s18, 1
      %p78 = por %p76, %p77
      %p79 = scmp.ne.s32.totalorder %s70, %s71
      %p80 = scmp.eq.s32.totalorder %s18, 0
      %p81 = por %p79, %p80
      %p82 = scmp.ne.s32.totalorder %s70, %s71
      %p83 = scmp.eq.s32.totalorder %s19, 1
      %p84 = por %p82, %p83
      %p86 = scmp.ne.s32.totalorder %s71, %s85
      %p87 = scmp.eq.s32.totalorder %s19, 0
      %p88 = por %p86, %p87
      %s90 = sadd.s32 %s89, 1
      %p93 = scmp.eq.s32.totalorder %s13, 1
      %p94 = scmp.ne.s32.totalorder %s89, %s91
      %p95 = scmp.eq.s32.totalorder %s13, 0
      %p96 = por %p94, %p95
      %p97 = scmp.ne.s32.totalorder %s89, %s91
      %p98 = scmp.eq.s32.totalorder %s18, 1
      %p99 = por %p97, %p98
      %p100 = scmp.ne.s32.totalorder %s91, %s92
      %p101 = scmp.eq.s32.totalorder %s18, 0
      %p102 = por %p100, %p101
      %p103 = scmp.ne.s32.totalorder %s91, %s92
      %p104 = scmp.eq.s32.totalorder %s19, 1
      %p105 = por %p103, %p104
      %p107 = scmp.ne.s32.totalorder %s92, %s106
      %p108 = scmp.eq.s32.totalorder %s19, 0
      %p109 = por %p107, %p108
      %s110 = ssub.s32 %s13, %s20
      %p111 = scmp.eq.s32.totalorder %s110, 0
      %s113 = sadd.s32 %s112, 1
      %s114 = scalar_select %p111, %s112, %s113
      %p117 = pneg %p111
      %p118 = scmp.eq.s32.totalorder %s13, 1
      %p119 = por %p117, %p118
      %p120 = scmp.ne.s32.totalorder %s112, %s115
      %p121 = scmp.eq.s32.totalorder %s13, 0
      %p122 = por %p120, %p121
      %p123 = scmp.ne.s32.totalorder %s112, %s115
      %p124 = scmp.eq.s32.totalorder %s18, 1
      %p125 = por %p123, %p124
      %p126 = scmp.ne.s32.totalorder %s115, %s116
      %p127 = scmp.eq.s32.totalorder %s18, 0
      %p128 = por %p126, %p127
      %p129 = scmp.ne.s32.totalorder %s115, %s116
      %p130 = scmp.eq.s32.totalorder %s19, 1
      %p131 = por %p129, %p130
      %p133 = scmp.ne.s32.totalorder %s116, %s132
      %p134 = scmp.eq.s32.totalorder %s19, 0
      %p135 = por %p133, %p134
      %p136 = scmp.le.s32.totalorder 1, %s13
      %p137 = scmp.lt.s32.totalorder %s13, 3
      %p138 = pnand %p136, %p137
      %p139 = pneg %p138
      // Predicated region
      $region9: #{tpu_custom_call.1} parent=5 // pred_check
        _
      $region10: #{tpu_custom_call.1} parent=5 // pred_check_branch
        %141 = sbr.rel (%p138) target = $region12
      $region11: #{tpu_custom_call.1} parent=5 // pred_region
        %s142 = ssub.s32 %s13, 1
        // Predicated region
        $region13: #{tpu_custom_call.1} parent=11 // pred_check
          %p143 = pneg %p60
        $region14: #{tpu_custom_call.1} parent=11 // pred_check_branch
          %145 = sbr.rel (%p143) target = $region16
        $region15: #{tpu_custom_call.1} parent=11 // pred_region
          _
        $region16: #{tpu_custom_call.1} parent=11 // pred_fallthru
          _
        // Predicated region
        $region17: #{tpu_custom_call.1} parent=11 // pred_check
          %p146 = pneg %p81
        $region18: #{tpu_custom_call.1} parent=11 // pred_check_branch
          %148 = sbr.rel (%p146) target = $region20
        $region19: #{tpu_custom_call.1} parent=11 // pred_region
          _
        $region20: #{tpu_custom_call.1} parent=11 // pred_fallthru
          _
        // Predicated region
        $region21: #{tpu_custom_call.1} parent=11 // pred_check
          %p149 = pneg %p102
        $region22: #{tpu_custom_call.1} parent=11 // pred_check_branch
          %151 = sbr.rel (%p149) target = $region24
        $region23: #{tpu_custom_call.1} parent=11 // pred_region
          _
        $region24: #{tpu_custom_call.1} parent=11 // pred_fallthru
          _
      $region12: #{tpu_custom_call.1} parent=5 // pred_fallthru
        _
      %p152 = scmp.lt.s32.totalorder %s13, 2
      // Predicated region
      $region25: #{tpu_custom_call.1} parent=5 // pred_check
        %p153 = pneg %p152
      $region26: #{tpu_custom_call.1} parent=5 // pred_check_branch
        %155 = sbr.rel (%p153) target = $region28
      $region27: #{tpu_custom_call.1} parent=5 // pred_region
        // Predicated region
        $region29: #{tpu_custom_call.1} parent=27 // pred_check
          %p156 = pneg %p33
        $region30: #{tpu_custom_call.1} parent=27 // pred_check_branch
          %158 = sbr.rel (%p156) target = $region32
        $region31: #{tpu_custom_call.1} parent=27 // pred_region
          %s159 = smul.u32 256, %s13
          %p160 = scmp.lt.s32.totalorder %s159, 511
          %s161 = scalar_select %p160, %s159, 511
          %s162 = smul.addr %s161, 8
          %s163 = scalar_lea.vmem %s0, %s162
          %s164 = smul.u32 256, %s13
        $region32: #{tpu_custom_call.1} parent=27 // pred_fallthru
          _
      $region28: #{tpu_custom_call.1} parent=5 // pred_fallthru
        _
      %p165 = scmp.le.s32.totalorder 1, %s13
      %p166 = scmp.lt.s32.totalorder %s13, 3
      %p167 = pnand %p165, %p166
      %p168 = pneg %p167
      // Predicated region
      $region33: #{tpu_custom_call.1} parent=5 // pred_check
        _
      $region34: #{tpu_custom_call.1} parent=5 // pred_check_branch
        %170 = sbr.rel (%p167) target = $region36
      $region35: #{tpu_custom_call.1} parent=5 // pred_region
        %s171 = ssub.s32 %s13, 1
        %s172 = smul.u32 256, %s18
        %p173 = scmp.lt.s32.totalorder %s172, 511
        %s174 = scalar_select %p173, %s172, 511
        %s175 = smul.addr %s174, 8
        %s176 = scalar_lea.vmem %s0, %s175
        %p177 = pneg %p39
        %p178 = pneg %p36
        %p179 = pneg %p60
        %p180 = pneg %p57
        %p181 = pneg %p81
        %p182 = pneg %p78
        %p183 = pneg %p102
        %p184 = pneg %p99
        %p185 = pneg %p128
        %p186 = pneg %p125
        %s187 = sand.u32 %s115, 1
        %s188 = scalar_lea.sflag [#allocation3], %s187
        %s189 = sand.u32 %s115, 1
        %s190 = smul.addr %s189, 8
        %s191 = scalar_lea.vmem [#allocation2], %s190
        %s192 = smul.u32 256, %s18
        %p193 = scmp.lt.s32.totalorder %s192, 511
        %s194 = scalar_select %p193, %s192, 511
        %s195 = smul.addr %s194, 8
        %s196 = scalar_lea.vmem %s0, %s195
        %s197 = smul.u32 256, %s18
        %v199 = vld [vmem:[%s196] sm:$0xff]
        %v200 = vld [vmem:[%s196 + $0x8] sm:$0xff]
        %v201 = vld [vmem:[%s196 + $0x10] sm:$0xff]
        %v202 = vld [vmem:[%s196 + $0x18] sm:$0xff]
        %v203 = vld [vmem:[%s196 + $0x20] sm:$0xff]
        %v204 = vld [vmem:[%s196 + $0x28] sm:$0xff]
        %v205 = vld [vmem:[%s196 + $0x30] sm:$0xff]
        %v206 = vld [vmem:[%s196 + $0x38] sm:$0xff]
        %v207 = vld [vmem:[%s196 + $0x40] sm:$0xff]
        %v208 = vld [vmem:[%s196 + $0x48] sm:$0xff]
        %v209 = vld [vmem:[%s196 + $0x50] sm:$0xff]
        %v210 = vld [vmem:[%s196 + $0x58] sm:$0xff]
        %v211 = vld [vmem:[%s196 + $0x60] sm:$0xff]
        %v212 = vld [vmem:[%s196 + $0x68] sm:$0xff]
        %v213 = vld [vmem:[%s196 + $0x70] sm:$0xff]
        %v214 = vld [vmem:[%s196 + $0x78] sm:$0xff]
        %v215 = vld [vmem:[%s196 + $0x80] sm:$0xff]
        %v216 = vld [vmem:[%s196 + $0x88] sm:$0xff]
        %v217 = vld [vmem:[%s196 + $0x90] sm:$0xff]
        %v218 = vld [vmem:[%s196 + $0x98] sm:$0xff]
        %v219 = vld [vmem:[%s196 + $0xa0] sm:$0xff]
        %v220 = vld [vmem:[%s196 + $0xa8] sm:$0xff]
        %v221 = vld [vmem:[%s196 + $0xb0] sm:$0xff]
        %v222 = vld [vmem:[%s196 + $0xb8] sm:$0xff]
        %v223 = vld [vmem:[%s196 + $0xc0] sm:$0xff]
        %v224 = vld [vmem:[%s196 + $0xc8] sm:$0xff]
        %v225 = vld [vmem:[%s196 + $0xd0] sm:$0xff]
        %v226 = vld [vmem:[%s196 + $0xd8] sm:$0xff]
        %v227 = vld [vmem:[%s196 + $0xe0] sm:$0xff]
        %v228 = vld [vmem:[%s196 + $0xe8] sm:$0xff]
        %v229 = vld [vmem:[%s196 + $0xf0] sm:$0xff]
        %v230 = vld [vmem:[%s196 + $0xf8] sm:$0xff]
        %v231 = vld [vmem:[%s196 + $0x100] sm:$0xff]
        %v232 = vld [vmem:[%s196 + $0x108] sm:$0xff]
        %v233 = vld [vmem:[%s196 + $0x110] sm:$0xff]
        %v234 = vld [vmem:[%s196 + $0x118] sm:$0xff]
        %v235 = vld [vmem:[%s196 + $0x120] sm:$0xff]
        %v236 = vld [vmem:[%s196 + $0x128] sm:$0xff]
        %v237 = vld [vmem:[%s196 + $0x130] sm:$0xff]
        %v238 = vld [vmem:[%s196 + $0x138] sm:$0xff]
        %v239 = vld [vmem:[%s196 + $0x140] sm:$0xff]
        %v240 = vld [vmem:[%s196 + $0x148] sm:$0xff]
        %v241 = vld [vmem:[%s196 + $0x150] sm:$0xff]
        %v242 = vld [vmem:[%s196 + $0x158] sm:$0xff]
        %v243 = vld [vmem:[%s196 + $0x160] sm:$0xff]
        %v244 = vld [vmem:[%s196 + $0x168] sm:$0xff]
        %v245 = vld [vmem:[%s196 + $0x170] sm:$0xff]
        %v246 = vld [vmem:[%s196 + $0x178] sm:$0xff]
        %v247 = vld [vmem:[%s196 + $0x180] sm:$0xff]
        %v248 = vld [vmem:[%s196 + $0x188] sm:$0xff]
        %v249 = vld [vmem:[%s196 + $0x190] sm:$0xff]
        %v250 = vld [vmem:[%s196 + $0x198] sm:$0xff]
        %v251 = vld [vmem:[%s196 + $0x1a0] sm:$0xff]
        %v252 = vld [vmem:[%s196 + $0x1a8] sm:$0xff]
        %v253 = vld [vmem:[%s196 + $0x1b0] sm:$0xff]
        %v254 = vld [vmem:[%s196 + $0x1b8] sm:$0xff]
        %v255 = vld [vmem:[%s196 + $0x1c0] sm:$0xff]
        %v256 = vld [vmem:[%s196 + $0x1c8] sm:$0xff]
        %v257 = vld [vmem:[%s196 + $0x1d0] sm:$0xff]
        %v258 = vld [vmem:[%s196 + $0x1d8] sm:$0xff]
        %v259 = vld [vmem:[%s196 + $0x1e0] sm:$0xff]
        %v260 = vld [vmem:[%s196 + $0x1e8] sm:$0xff]
        %v261 = vld [vmem:[%s196 + $0x1f0] sm:$0xff]
        %v262 = vld [vmem:[%s196 + $0x1f8] sm:$0xff]
        %v263 = vld [vmem:[%s196 + $0x200] sm:$0xff]
        %v264 = vld [vmem:[%s196 + $0x208] sm:$0xff]
        %v265 = vld [vmem:[%s196 + $0x210] sm:$0xff]
        %v266 = vld [vmem:[%s196 + $0x218] sm:$0xff]
        %v267 = vld [vmem:[%s196 + $0x220] sm:$0xff]
        %v268 = vld [vmem:[%s196 + $0x228] sm:$0xff]
        %v269 = vld [vmem:[%s196 + $0x230] sm:$0xff]
        %v270 = vld [vmem:[%s196 + $0x238] sm:$0xff]
        %v271 = vld [vmem:[%s196 + $0x240] sm:$0xff]
        %v272 = vld [vmem:[%s196 + $0x248] sm:$0xff]
        %v273 = vld [vmem:[%s196 + $0x250] sm:$0xff]
        %v274 = vld [vmem:[%s196 + $0x258] sm:$0xff]
        %v275 = vld [vmem:[%s196 + $0x260] sm:$0xff]
        %v276 = vld [vmem:[%s196 + $0x268] sm:$0xff]
        %v277 = vld [vmem:[%s196 + $0x270] sm:$0xff]
        %v278 = vld [vmem:[%s196 + $0x278] sm:$0xff]
        %v279 = vld [vmem:[%s196 + $0x280] sm:$0xff]
        %v280 = vld [vmem:[%s196 + $0x288] sm:$0xff]
        %v281 = vld [vmem:[%s196 + $0x290] sm:$0xff]
        %v282 = vld [vmem:[%s196 + $0x298] sm:$0xff]
        %v283 = vld [vmem:[%s196 + $0x2a0] sm:$0xff]
        %v284 = vld [vmem:[%s196 + $0x2a8] sm:$0xff]
        %v285 = vld [vmem:[%s196 + $0x2b0] sm:$0xff]
        %v286 = vld [vmem:[%s196 + $0x2b8] sm:$0xff]
        %v287 = vld [vmem:[%s196 + $0x2c0] sm:$0xff]
        %v288 = vld [vmem:[%s196 + $0x2c8] sm:$0xff]
        %v289 = vld [vmem:[%s196 + $0x2d0] sm:$0xff]
        %v290 = vld [vmem:[%s196 + $0x2d8] sm:$0xff]
        %v291 = vld [vmem:[%s196 + $0x2e0] sm:$0xff]
        %v292 = vld [vmem:[%s196 + $0x2e8] sm:$0xff]
        %v293 = vld [vmem:[%s196 + $0x2f0] sm:$0xff]
        %v294 = vld [vmem:[%s196 + $0x2f8] sm:$0xff]
        %v295 = vld [vmem:[%s196 + $0x300] sm:$0xff]
        %v296 = vld [vmem:[%s196 + $0x308] sm:$0xff]
        %v297 = vld [vmem:[%s196 + $0x310] sm:$0xff]
        %v298 = vld [vmem:[%s196 + $0x318] sm:$0xff]
        %v299 = vld [vmem:[%s196 + $0x320] sm:$0xff]
        %v300 = vld [vmem:[%s196 + $0x328] sm:$0xff]
        %v301 = vld [vmem:[%s196 + $0x330] sm:$0xff]
        %v302 = vld [vmem:[%s196 + $0x338] sm:$0xff]
        %v303 = vld [vmem:[%s196 + $0x340] sm:$0xff]
        %v304 = vld [vmem:[%s196 + $0x348] sm:$0xff]
        %v305 = vld [vmem:[%s196 + $0x350] sm:$0xff]
        %v306 = vld [vmem:[%s196 + $0x358] sm:$0xff]
        %v307 = vld [vmem:[%s196 + $0x360] sm:$0xff]
        %v308 = vld [vmem:[%s196 + $0x368] sm:$0xff]
        %v309 = vld [vmem:[%s196 + $0x370] sm:$0xff]
        %v310 = vld [vmem:[%s196 + $0x378] sm:$0xff]
        %v311 = vld [vmem:[%s196 + $0x380] sm:$0xff]
        %v312 = vld [vmem:[%s196 + $0x388] sm:$0xff]
        %v313 = vld [vmem:[%s196 + $0x390] sm:$0xff]
        %v314 = vld [vmem:[%s196 + $0x398] sm:$0xff]
        %v315 = vld [vmem:[%s196 + $0x3a0] sm:$0xff]
        %v316 = vld [vmem:[%s196 + $0x3a8] sm:$0xff]
        %v317 = vld [vmem:[%s196 + $0x3b0] sm:$0xff]
        %v318 = vld [vmem:[%s196 + $0x3b8] sm:$0xff]
        %v319 = vld [vmem:[%s196 + $0x3c0] sm:$0xff]
        %v320 = vld [vmem:[%s196 + $0x3c8] sm:$0xff]
        %v321 = vld [vmem:[%s196 + $0x3d0] sm:$0xff]
        %v322 = vld [vmem:[%s196 + $0x3d8] sm:$0xff]
        %v323 = vld [vmem:[%s196 + $0x3e0] sm:$0xff]
        %v324 = vld [vmem:[%s196 + $0x3e8] sm:$0xff]
        %v325 = vld [vmem:[%s196 + $0x3f0] sm:$0xff]
        %v326 = vld [vmem:[%s196 + $0x3f8] sm:$0xff]
        %v327 = vld [vmem:[%s196 + $0x400] sm:$0xff]
        %v328 = vld [vmem:[%s196 + $0x408] sm:$0xff]
        %v329 = vld [vmem:[%s196 + $0x410] sm:$0xff]
        %v330 = vld [vmem:[%s196 + $0x418] sm:$0xff]
        %v331 = vld [vmem:[%s196 + $0x420] sm:$0xff]
        %v332 = vld [vmem:[%s196 + $0x428] sm:$0xff]
        %v333 = vld [vmem:[%s196 + $0x430] sm:$0xff]
        %v334 = vld [vmem:[%s196 + $0x438] sm:$0xff]
        %v335 = vld [vmem:[%s196 + $0x440] sm:$0xff]
        %v336 = vld [vmem:[%s196 + $0x448] sm:$0xff]
        %v337 = vld [vmem:[%s196 + $0x450] sm:$0xff]
        %v338 = vld [vmem:[%s196 + $0x458] sm:$0xff]
        %v339 = vld [vmem:[%s196 + $0x460] sm:$0xff]
        %v340 = vld [vmem:[%s196 + $0x468] sm:$0xff]
        %v341 = vld [vmem:[%s196 + $0x470] sm:$0xff]
        %v342 = vld [vmem:[%s196 + $0x478] sm:$0xff]
        %v343 = vld [vmem:[%s196 + $0x480] sm:$0xff]
        %v344 = vld [vmem:[%s196 + $0x488] sm:$0xff]
        %v345 = vld [vmem:[%s196 + $0x490] sm:$0xff]
        %v346 = vld [vmem:[%s196 + $0x498] sm:$0xff]
        %v347 = vld [vmem:[%s196 + $0x4a0] sm:$0xff]
        %v348 = vld [vmem:[%s196 + $0x4a8] sm:$0xff]
        %v349 = vld [vmem:[%s196 + $0x4b0] sm:$0xff]
        %v350 = vld [vmem:[%s196 + $0x4b8] sm:$0xff]
        %v351 = vld [vmem:[%s196 + $0x4c0] sm:$0xff]
        %v352 = vld [vmem:[%s196 + $0x4c8] sm:$0xff]
        %v353 = vld [vmem:[%s196 + $0x4d0] sm:$0xff]
        %v354 = vld [vmem:[%s196 + $0x4d8] sm:$0xff]
        %v355 = vld [vmem:[%s196 + $0x4e0] sm:$0xff]
        %v356 = vld [vmem:[%s196 + $0x4e8] sm:$0xff]
        %v357 = vld [vmem:[%s196 + $0x4f0] sm:$0xff]
        %v358 = vld [vmem:[%s196 + $0x4f8] sm:$0xff]
        %v359 = vld [vmem:[%s196 + $0x500] sm:$0xff]
        %v360 = vld [vmem:[%s196 + $0x508] sm:$0xff]
        %v361 = vld [vmem:[%s196 + $0x510] sm:$0xff]
        %v362 = vld [vmem:[%s196 + $0x518] sm:$0xff]
        %v363 = vld [vmem:[%s196 + $0x520] sm:$0xff]
        %v364 = vld [vmem:[%s196 + $0x528] sm:$0xff]
        %v365 = vld [vmem:[%s196 + $0x530] sm:$0xff]
        %v366 = vld [vmem:[%s196 + $0x538] sm:$0xff]
        %v367 = vld [vmem:[%s196 + $0x540] sm:$0xff]
        %v368 = vld [vmem:[%s196 + $0x548] sm:$0xff]
        %v369 = vld [vmem:[%s196 + $0x550] sm:$0xff]
        %v370 = vld [vmem:[%s196 + $0x558] sm:$0xff]
        %v371 = vld [vmem:[%s196 + $0x560] sm:$0xff]
        %v372 = vld [vmem:[%s196 + $0x568] sm:$0xff]
        %v373 = vld [vmem:[%s196 + $0x570] sm:$0xff]
        %v374 = vld [vmem:[%s196 + $0x578] sm:$0xff]
        %v375 = vld [vmem:[%s196 + $0x580] sm:$0xff]
        %v376 = vld [vmem:[%s196 + $0x588] sm:$0xff]
        %v377 = vld [vmem:[%s196 + $0x590] sm:$0xff]
        %v378 = vld [vmem:[%s196 + $0x598] sm:$0xff]
        %v379 = vld [vmem:[%s196 + $0x5a0] sm:$0xff]
        %v380 = vld [vmem:[%s196 + $0x5a8] sm:$0xff]
        %v381 = vld [vmem:[%s196 + $0x5b0] sm:$0xff]
        %v382 = vld [vmem:[%s196 + $0x5b8] sm:$0xff]
        %v383 = vld [vmem:[%s196 + $0x5c0] sm:$0xff]
        %v384 = vld [vmem:[%s196 + $0x5c8] sm:$0xff]
        %v385 = vld [vmem:[%s196 + $0x5d0] sm:$0xff]
        %v386 = vld [vmem:[%s196 + $0x5d8] sm:$0xff]
        %v387 = vld [vmem:[%s196 + $0x5e0] sm:$0xff]
        %v388 = vld [vmem:[%s196 + $0x5e8] sm:$0xff]
        %v389 = vld [vmem:[%s196 + $0x5f0] sm:$0xff]
        %v390 = vld [vmem:[%s196 + $0x5f8] sm:$0xff]
        %v391 = vld [vmem:[%s196 + $0x600] sm:$0xff]
        %v392 = vld [vmem:[%s196 + $0x608] sm:$0xff]
        %v393 = vld [vmem:[%s196 + $0x610] sm:$0xff]
        %v394 = vld [vmem:[%s196 + $0x618] sm:$0xff]
        %v395 = vld [vmem:[%s196 + $0x620] sm:$0xff]
        %v396 = vld [vmem:[%s196 + $0x628] sm:$0xff]
        %v397 = vld [vmem:[%s196 + $0x630] sm:$0xff]
        %v398 = vld [vmem:[%s196 + $0x638] sm:$0xff]
        %v399 = vld [vmem:[%s196 + $0x640] sm:$0xff]
        %v400 = vld [vmem:[%s196 + $0x648] sm:$0xff]
        %v401 = vld [vmem:[%s196 + $0x650] sm:$0xff]
        %v402 = vld [vmem:[%s196 + $0x658] sm:$0xff]
        %v403 = vld [vmem:[%s196 + $0x660] sm:$0xff]
        %v404 = vld [vmem:[%s196 + $0x668] sm:$0xff]
        %v405 = vld [vmem:[%s196 + $0x670] sm:$0xff]
        %v406 = vld [vmem:[%s196 + $0x678] sm:$0xff]
        %v407 = vld [vmem:[%s196 + $0x680] sm:$0xff]
        %v408 = vld [vmem:[%s196 + $0x688] sm:$0xff]
        %v409 = vld [vmem:[%s196 + $0x690] sm:$0xff]
        %v410 = vld [vmem:[%s196 + $0x698] sm:$0xff]
        %v411 = vld [vmem:[%s196 + $0x6a0] sm:$0xff]
        %v412 = vld [vmem:[%s196 + $0x6a8] sm:$0xff]
        %v413 = vld [vmem:[%s196 + $0x6b0] sm:$0xff]
        %v414 = vld [vmem:[%s196 + $0x6b8] sm:$0xff]
        %v415 = vld [vmem:[%s196 + $0x6c0] sm:$0xff]
        %v416 = vld [vmem:[%s196 + $0x6c8] sm:$0xff]
        %v417 = vld [vmem:[%s196 + $0x6d0] sm:$0xff]
        %v418 = vld [vmem:[%s196 + $0x6d8] sm:$0xff]
        %v419 = vld [vmem:[%s196 + $0x6e0] sm:$0xff]
        %v420 = vld [vmem:[%s196 + $0x6e8] sm:$0xff]
        %v421 = vld [vmem:[%s196 + $0x6f0] sm:$0xff]
        %v422 = vld [vmem:[%s196 + $0x6f8] sm:$0xff]
        %v423 = vld [vmem:[%s196 + $0x700] sm:$0xff]
        %v424 = vld [vmem:[%s196 + $0x708] sm:$0xff]
        %v425 = vld [vmem:[%s196 + $0x710] sm:$0xff]
        %v426 = vld [vmem:[%s196 + $0x718] sm:$0xff]
        %v427 = vld [vmem:[%s196 + $0x720] sm:$0xff]
        %v428 = vld [vmem:[%s196 + $0x728] sm:$0xff]
        %v429 = vld [vmem:[%s196 + $0x730] sm:$0xff]
        %v430 = vld [vmem:[%s196 + $0x738] sm:$0xff]
        %v431 = vld [vmem:[%s196 + $0x740] sm:$0xff]
        %v432 = vld [vmem:[%s196 + $0x748] sm:$0xff]
        %v433 = vld [vmem:[%s196 + $0x750] sm:$0xff]
        %v434 = vld [vmem:[%s196 + $0x758] sm:$0xff]
        %v435 = vld [vmem:[%s196 + $0x760] sm:$0xff]
        %v436 = vld [vmem:[%s196 + $0x768] sm:$0xff]
        %v437 = vld [vmem:[%s196 + $0x770] sm:$0xff]
        %v438 = vld [vmem:[%s196 + $0x778] sm:$0xff]
        %v439 = vld [vmem:[%s196 + $0x780] sm:$0xff]
        %v440 = vld [vmem:[%s196 + $0x788] sm:$0xff]
        %v441 = vld [vmem:[%s196 + $0x790] sm:$0xff]
        %v442 = vld [vmem:[%s196 + $0x798] sm:$0xff]
        %v443 = vld [vmem:[%s196 + $0x7a0] sm:$0xff]
        %v444 = vld [vmem:[%s196 + $0x7a8] sm:$0xff]
        %v445 = vld [vmem:[%s196 + $0x7b0] sm:$0xff]
        %v446 = vld [vmem:[%s196 + $0x7b8] sm:$0xff]
        %v447 = vld [vmem:[%s196 + $0x7c0] sm:$0xff]
        %v448 = vld [vmem:[%s196 + $0x7c8] sm:$0xff]
        %v449 = vld [vmem:[%s196 + $0x7d0] sm:$0xff]
        %v450 = vld [vmem:[%s196 + $0x7d8] sm:$0xff]
        %v451 = vld [vmem:[%s196 + $0x7e0] sm:$0xff]
        %v452 = vld [vmem:[%s196 + $0x7e8] sm:$0xff]
        %v453 = vld [vmem:[%s196 + $0x7f0] sm:$0xff]
        %v454 = vld [vmem:[%s196 + $0x7f8] sm:$0xff]
        %v455 = vpack.c.bf16 %v200, %v199
        %v456 = vpack.c.bf16 %v202, %v201
        %v457 = vpack.c.bf16 %v204, %v203
        %v458 = vpack.c.bf16 %v206, %v205
        %v459 = vpack.c.bf16 %v208, %v207
        %v460 = vpack.c.bf16 %v210, %v209
        %v461 = vpack.c.bf16 %v212, %v211
        %v462 = vpack.c.bf16 %v214, %v213
        %v463 = vpack.c.bf16 %v216, %v215
        %v464 = vpack.c.bf16 %v218, %v217
        %v465 = vpack.c.bf16 %v220, %v219
        %v466 = vpack.c.bf16 %v222, %v221
        %v467 = vpack.c.bf16 %v224, %v223
        %v468 = vpack.c.bf16 %v226, %v225
        %v469 = vpack.c.bf16 %v228, %v227
        %v470 = vpack.c.bf16 %v230, %v229
        %v471 = vpack.c.bf16 %v232, %v231
        %v472 = vpack.c.bf16 %v234, %v233
        %v473 = vpack.c.bf16 %v236, %v235
        %v474 = vpack.c.bf16 %v238, %v237
        %v475 = vpack.c.bf16 %v240, %v239
        %v476 = vpack.c.bf16 %v242, %v241
        %v477 = vpack.c.bf16 %v244, %v243
        %v478 = vpack.c.bf16 %v246, %v245
        %v479 = vpack.c.bf16 %v248, %v247
        %v480 = vpack.c.bf16 %v250, %v249
        %v481 = vpack.c.bf16 %v252, %v251
        %v482 = vpack.c.bf16 %v254, %v253
        %v483 = vpack.c.bf16 %v256, %v255
        %v484 = vpack.c.bf16 %v258, %v257
        %v485 = vpack.c.bf16 %v260, %v259
        %v486 = vpack.c.bf16 %v262, %v261
        %v487 = vpack.c.bf16 %v264, %v263
        %v488 = vpack.c.bf16 %v266, %v265
        %v489 = vpack.c.bf16 %v268, %v267
        %v490 = vpack.c.bf16 %v270, %v269
        %v491 = vpack.c.bf16 %v272, %v271
        %v492 = vpack.c.bf16 %v274, %v273
        %v493 = vpack.c.bf16 %v276, %v275
        %v494 = vpack.c.bf16 %v278, %v277
        %v495 = vpack.c.bf16 %v280, %v279
        %v496 = vpack.c.bf16 %v282, %v281
        %v497 = vpack.c.bf16 %v284, %v283
        %v498 = vpack.c.bf16 %v286, %v285
        %v499 = vpack.c.bf16 %v288, %v287
        %v500 = vpack.c.bf16 %v290, %v289
        %v501 = vpack.c.bf16 %v292, %v291
        %v502 = vpack.c.bf16 %v294, %v293
        %v503 = vpack.c.bf16 %v296, %v295
        %v504 = vpack.c.bf16 %v298, %v297
        %v505 = vpack.c.bf16 %v300, %v299
        %v506 = vpack.c.bf16 %v302, %v301
        %v507 = vpack.c.bf16 %v304, %v303
        %v508 = vpack.c.bf16 %v306, %v305
        %v509 = vpack.c.bf16 %v308, %v307
        %v510 = vpack.c.bf16 %v310, %v309
        %v511 = vpack.c.bf16 %v312, %v311
        %v512 = vpack.c.bf16 %v314, %v313
        %v513 = vpack.c.bf16 %v316, %v315
        %v514 = vpack.c.bf16 %v318, %v317
        %v515 = vpack.c.bf16 %v320, %v319
        %v516 = vpack.c.bf16 %v322, %v321
        %v517 = vpack.c.bf16 %v324, %v323
        %v518 = vpack.c.bf16 %v326, %v325
        %v519 = vpack.c.bf16 %v328, %v327
        %v520 = vpack.c.bf16 %v330, %v329
        %v521 = vpack.c.bf16 %v332, %v331
        %v522 = vpack.c.bf16 %v334, %v333
        %v523 = vpack.c.bf16 %v336, %v335
        %v524 = vpack.c.bf16 %v338, %v337
        %v525 = vpack.c.bf16 %v340, %v339
        %v526 = vpack.c.bf16 %v342, %v341
        %v527 = vpack.c.bf16 %v344, %v343
        %v528 = vpack.c.bf16 %v346, %v345
        %v529 = vpack.c.bf16 %v348, %v347
        %v530 = vpack.c.bf16 %v350, %v349
        %v531 = vpack.c.bf16 %v352, %v351
        %v532 = vpack.c.bf16 %v354, %v353
        %v533 = vpack.c.bf16 %v356, %v355
        %v534 = vpack.c.bf16 %v358, %v357
        %v535 = vpack.c.bf16 %v360, %v359
        %v536 = vpack.c.bf16 %v362, %v361
        %v537 = vpack.c.bf16 %v364, %v363
        %v538 = vpack.c.bf16 %v366, %v365
        %v539 = vpack.c.bf16 %v368, %v367
        %v540 = vpack.c.bf16 %v370, %v369
        %v541 = vpack.c.bf16 %v372, %v371
        %v542 = vpack.c.bf16 %v374, %v373
        %v543 = vpack.c.bf16 %v376, %v375
        %v544 = vpack.c.bf16 %v378, %v377
        %v545 = vpack.c.bf16 %v380, %v379
        %v546 = vpack.c.bf16 %v382, %v381
        %v547 = vpack.c.bf16 %v384, %v383
        %v548 = vpack.c.bf16 %v386, %v385
        %v549 = vpack.c.bf16 %v388, %v387
        %v550 = vpack.c.bf16 %v390, %v389
        %v551 = vpack.c.bf16 %v392, %v391
        %v552 = vpack.c.bf16 %v394, %v393
        %v553 = vpack.c.bf16 %v396, %v395
        %v554 = vpack.c.bf16 %v398, %v397
        %v555 = vpack.c.bf16 %v400, %v399
        %v556 = vpack.c.bf16 %v402, %v401
        %v557 = vpack.c.bf16 %v404, %v403
        %v558 = vpack.c.bf16 %v406, %v405
        %v559 = vpack.c.bf16 %v408, %v407
        %v560 = vpack.c.bf16 %v410, %v409
        %v561 = vpack.c.bf16 %v412, %v411
        %v562 = vpack.c.bf16 %v414, %v413
        %v563 = vpack.c.bf16 %v416, %v415
        %v564 = vpack.c.bf16 %v418, %v417
        %v565 = vpack.c.bf16 %v420, %v419
        %v566 = vpack.c.bf16 %v422, %v421
        %v567 = vpack.c.bf16 %v424, %v423
        %v568 = vpack.c.bf16 %v426, %v425
        %v569 = vpack.c.bf16 %v428, %v427
        %v570 = vpack.c.bf16 %v430, %v429
        %v571 = vpack.c.bf16 %v432, %v431
        %v572 = vpack.c.bf16 %v434, %v433
        %v573 = vpack.c.bf16 %v436, %v435
        %v574 = vpack.c.bf16 %v438, %v437
        %v575 = vpack.c.bf16 %v440, %v439
        %v576 = vpack.c.bf16 %v442, %v441
        %v577 = vpack.c.bf16 %v444, %v443
        %v578 = vpack.c.bf16 %v446, %v445
        %v579 = vpack.c.bf16 %v448, %v447
        %v580 = vpack.c.bf16 %v450, %v449
        %v581 = vpack.c.bf16 %v452, %v451
        %v582 = vpack.c.bf16 %v454, %v453
        %v583 = vld [vmem:[%s1] sm:$0x3]
        %v584 = vld [vmem:[%s2] sm:$0x1]
        %v586 = vlaneseq
        %v587 = vshrl.u32 %v586, 7
        %v588 = vsub.s32 0, %v587
        %v589 = vrot.slane %v584, %v588
        %vm591 = vcmask 31744
        %v593 = vsel %vm591, %v455, 0
        %v596 = vsel %vm591, %v456, 0
        %v599 = vsel %vm591, %v457, 0
        %v602 = vsel %vm591, %v458, 0
        %v605 = vsel %vm591, %v459, 0
        %v608 = vsel %vm591, %v460, 0
        %v611 = vsel %vm591, %v461, 0
        %v614 = vsel %vm591, %v462, 0
        %v617 = vsel %vm591, %v463, 0
        %v620 = vsel %vm591, %v464, 0
        %v623 = vsel %vm591, %v465, 0
        %v626 = vsel %vm591, %v466, 0
        %v629 = vsel %vm591, %v467, 0
        %v632 = vsel %vm591, %v468, 0
        %v635 = vsel %vm591, %v469, 0
        %v638 = vsel %vm591, %v470, 0
        %v641 = vsel %vm591, %v471, 0
        %v644 = vsel %vm591, %v472, 0
        %v647 = vsel %vm591, %v473, 0
        %v650 = vsel %vm591, %v474, 0
        %v653 = vsel %vm591, %v475, 0
        %v656 = vsel %vm591, %v476, 0
        %v659 = vsel %vm591, %v477, 0
        %v662 = vsel %vm591, %v478, 0
        %v665 = vsel %vm591, %v479, 0
        %v668 = vsel %vm591, %v480, 0
        %v671 = vsel %vm591, %v481, 0
        %v674 = vsel %vm591, %v482, 0
        %v677 = vsel %vm591, %v483, 0
        %v680 = vsel %vm591, %v484, 0
        %v683 = vsel %vm591, %v485, 0
        %v686 = vsel %vm591, %v486, 0
        %v689 = vsel %vm591, %v487, 0
        %v692 = vsel %vm591, %v488, 0
        %v695 = vsel %vm591, %v489, 0
        %v698 = vsel %vm591, %v490, 0
        %v701 = vsel %vm591, %v491, 0
        %v704 = vsel %vm591, %v492, 0
        %v707 = vsel %vm591, %v493, 0
        %v710 = vsel %vm591, %v494, 0
        %v713 = vsel %vm591, %v495, 0
        %v716 = vsel %vm591, %v496, 0
        %v719 = vsel %vm591, %v497, 0
        %v722 = vsel %vm591, %v498, 0
        %v725 = vsel %vm591, %v499, 0
        %v728 = vsel %vm591, %v500, 0
        %v731 = vsel %vm591, %v501, 0
        %v734 = vsel %vm591, %v502, 0
        %v737 = vsel %vm591, %v503, 0
        %v740 = vsel %vm591, %v504, 0
        %v743 = vsel %vm591, %v505, 0
        %v746 = vsel %vm591, %v506, 0
        %v749 = vsel %vm591, %v507, 0
        %v752 = vsel %vm591, %v508, 0
        %v755 = vsel %vm591, %v509, 0
        %v758 = vsel %vm591, %v510, 0
        %v761 = vsel %vm591, %v511, 0
        %v764 = vsel %vm591, %v512, 0
        %v767 = vsel %vm591, %v513, 0
        %v770 = vsel %vm591, %v514, 0
        %v773 = vsel %vm591, %v515, 0
        %v776 = vsel %vm591, %v516, 0
        %v779 = vsel %vm591, %v517, 0
        %v782 = vsel %vm591, %v518, 0
        %v785 = vsel %vm591, %v519, 0
        %v788 = vsel %vm591, %v520, 0
        %v791 = vsel %vm591, %v521, 0
        %v794 = vsel %vm591, %v522, 0
        %v797 = vsel %vm591, %v523, 0
        %v800 = vsel %vm591, %v524, 0
        %v803 = vsel %vm591, %v525, 0
        %v806 = vsel %vm591, %v526, 0
        %v809 = vsel %vm591, %v527, 0
        %v812 = vsel %vm591, %v528, 0
        %v815 = vsel %vm591, %v529, 0
        %v818 = vsel %vm591, %v530, 0
        %v821 = vsel %vm591, %v531, 0
        %v824 = vsel %vm591, %v532, 0
        %v827 = vsel %vm591, %v533, 0
        %v830 = vsel %vm591, %v534, 0
        %v833 = vsel %vm591, %v535, 0
        %v836 = vsel %vm591, %v536, 0
        %v839 = vsel %vm591, %v537, 0
        %v842 = vsel %vm591, %v538, 0
        %v845 = vsel %vm591, %v539, 0
        %v848 = vsel %vm591, %v540, 0
        %v851 = vsel %vm591, %v541, 0
        %v854 = vsel %vm591, %v542, 0
        %v857 = vsel %vm591, %v543, 0
        %v860 = vsel %vm591, %v544, 0
        %v863 = vsel %vm591, %v545, 0
        %v866 = vsel %vm591, %v546, 0
        %v869 = vsel %vm591, %v547, 0
        %v872 = vsel %vm591, %v548, 0
        %v875 = vsel %vm591, %v549, 0
        %v878 = vsel %vm591, %v550, 0
        %v881 = vsel %vm591, %v551, 0
        %v884 = vsel %vm591, %v552, 0
        %v887 = vsel %vm591, %v553, 0
        %v890 = vsel %vm591, %v554, 0
        %v893 = vsel %vm591, %v555, 0
        %v896 = vsel %vm591, %v556, 0
        %v899 = vsel %vm591, %v557, 0
        %v902 = vsel %vm591, %v558, 0
        %v905 = vsel %vm591, %v559, 0
        %v908 = vsel %vm591, %v560, 0
        %v911 = vsel %vm591, %v561, 0
        %v914 = vsel %vm591, %v562, 0
        %v917 = vsel %vm591, %v563, 0
        %v920 = vsel %vm591, %v564, 0
        %v923 = vsel %vm591, %v565, 0
        %v926 = vsel %vm591, %v566, 0
        %v929 = vsel %vm591, %v567, 0
        %v932 = vsel %vm591, %v568, 0
        %v935 = vsel %vm591, %v569, 0
        %v938 = vsel %vm591, %v570, 0
        %v941 = vsel %vm591, %v571, 0
        %v944 = vsel %vm591, %v572, 0
        %v947 = vsel %vm591, %v573, 0
        %v950 = vsel %vm591, %v574, 0
        %v953 = vsel %vm591, %v575, 0
        %v956 = vsel %vm591, %v576, 0
        %v959 = vsel %vm591, %v577, 0
        %v962 = vsel %vm591, %v578, 0
        %v965 = vsel %vm591, %v579, 0
        %v968 = vsel %vm591, %v580, 0
        %v971 = vsel %vm591, %v581, 0
        %v974 = vsel %vm591, %v582, 0
        %vm976 = vcmask 1041408
        %v978 = vsel %vm976, %v583, 0
        %980 = vmatprep.subr.bf16.mxu0 0
        %981 = vmatpush1.bf16.msra.mxu0 %v978
        %982 = vmatprep.subr.bf16.mxu0 0
        %983 = vmatpush1.bf16.msra.mxu0 0
        %984 = vmatprep.subr.bf16.mxu0 0
        %985 = vmatpush1.bf16.msra.mxu0 0
        %986 = vmatprep.subr.bf16.mxu0 0
        %987 = vmatpush1.bf16.msra.mxu0 0
        %988 = vmatprep.subr.bf16.mxu0 0
        %989 = vmatpush1.bf16.msra.mxu0 0
        %990 = vmatprep.subr.bf16.mxu0 0
        %991 = vmatpush1.bf16.msra.mxu0 0
        %992 = vmatprep.subr.bf16.mxu0 0
        %993 = vmatpush1.bf16.msra.mxu0 0
        %994 = vmatprep.subr.bf16.mxu0 0
        %995 = vmatpush1.bf16.msra.mxu0 0
        %996 = vmatprep.subr.bf16.mxu0 0
        %997 = vmatpush1.bf16.msra.mxu0 0
        %998 = vmatprep.subr.bf16.mxu0 0
        %999 = vmatpush1.bf16.msra.mxu0 0
        %1000 = vmatprep.subr.bf16.mxu0 0
        %1001 = vmatpush1.bf16.msra.mxu0 0
        %1002 = vmatprep.subr.bf16.mxu0 0
        %1003 = vmatpush1.bf16.msra.mxu0 0
        %1004 = vmatprep.subr.bf16.mxu0 0
        %1005 = vmatpush1.bf16.msra.mxu0 0
        %1006 = vmatprep.subr.bf16.mxu0 0
        %1007 = vmatpush1.bf16.msra.mxu0 0
        %1008 = vmatprep.subr.bf16.mxu0 0
        %1009 = vmatpush1.bf16.msra.mxu0 0
        %1010 = vmatprep.subr.bf16.mxu0 0
        %1011 = vmatpush1.bf16.msra.mxu0 0
        %1012 = vmatprep.mubr.bf16.mxu0 0
        %1013 = vmatmul.mubr.bf16.gmra.mrb[0].mxu0 %v593
        %v1014 = vpop.f32.mrb[0].mxu0
        %v1015 = vadd.f32 %v589, %v1014
        %v1016 = vpop.f32.mrb[0].mxu0
        %v1017 = vpop.f32.mrb[0].mxu0
        %v1018 = vadd.f32 %v589, %v1017
        %v1019 = vpop.f32.mrb[0].mxu0
        %1020 = vmatprep.mubr.bf16.mxu0 0
        %1021 = vmatmul.mubr.bf16.gmra.mrb[0].mxu0 %v596
        %v1022 = vpop.f32.mrb[0].mxu0
        %v1023 = vadd.f32 %v589, %v1022
        %v1024 = vpop.f32.mrb[0].mxu0
        %v1025 = vpop.f32.mrb[0].mxu0
        %v1026 = vadd.f32 %v589, %v1025
        %v1027 = vpop.f32.mrb[0].mxu0
        %1028 = vmatprep.mubr.bf16.mxu0 0
        %1029 = vmatmul.mubr.bf16.gmra.mrb[0].mxu0 %v599
        %v1030 = vpop.f32.mrb[0].mxu0
        %v1031 = vadd.f32 %v589, %v1030
        %v1032 = vpop.f32.mrb[0].mxu0
        %v1033 = vpop.f32.mrb[0].mxu0
        %v1034 = vadd.f32 %v589, %v1033
        %v1035 = vpop.f32.mrb[0].mxu0
        %1036 = vmatprep.mubr.bf16.mxu0 0
        %1037 = vmatmul.mubr.bf16.gmra.mrb[0].mxu0 %v602
        %v1038 = vpop.f32.mrb[0].mxu0
        %v1039 = vadd.f32 %v589, %v1038
        %v1040 = vpop.f32.mrb[0].mxu0
        %v1041 = vpop.f32.mrb[0].mxu0
        %v1042 = vadd.f32 %v589, %v1041
        %v1043 = vpop.f32.mrb[0].mxu0
        %1044 = vmatprep.mubr.bf16.mxu0 0
        %1045 = vmatmul.mubr.bf16.gmra.mrb[0].mxu0 %v605
        %v1046 = vpop.f32.mrb[0].mxu0
        %v1047 = vadd.f32 %v589, %v1046
        %v1048 = vpop.f32.mrb[0].mxu0
        %v1049 = vpop.f32.mrb[0].mxu0
        %v1050 = vadd.f32 %v589, %v1049
        %v1051 = vpop.f32.mrb[0].mxu0
        %1052 = vmatprep.mubr.bf16.mxu0 0
        %1053 = vmatmul.mubr.bf16.gmra.mrb[0].mxu0 %v608
        %v1054 = vpop.f32.mrb[0].mxu0
        %v1055 = vadd.f32 %v589, %v1054
        %v1056 = vpop.f32.mrb[0].mxu0
        %v1057 = vpop.f32.mrb[0].mxu0
        %v1058 = vadd.f32 %v589, %v1057
        %v1059 = vpop.f32.mrb[0].mxu0
        %1060 = vmatprep.mubr.bf16.mxu0 0
        %1061 = vmatmul.mubr.bf16.gmra.mrb[0].mxu0 %v611
        %v1062 = vpop.f32.mrb[0].mxu0
        %v1063 = vadd.f32 %v589, %v1062
        %v1064 = vpop.f32.mrb[0].mxu0
        %v1065 = vpop.f32.mrb[0].mxu0
        %v1066 = vadd.f32 %v589, %v1065
        %v1067 = vpop.f32.mrb[0].mxu0
        %1068 = vmatprep.mubr.bf16.mxu0 0
        %1069 = vmatmul.mubr.bf16.gmra.mrb[0].mxu0 %v614
        %v1070 = vpop.f32.mrb[0].mxu0
        %v1071 = vadd.f32 %v589, %v1070
        %v1072 = vpop.f32.mrb[0].mxu0
        %v1073 = vpop.f32.mrb[0].mxu0
        %v1074 = vadd.f32 %v589, %v1073
        %v1075 = vpop.f32.mrb[0].mxu0
        %1076 = vmatprep.mubr.bf16.mxu0 0
        %1077 = vmatmul.mubr.bf16.gmra.mrb[0].mxu0 %v617
        %v1078 = vpop.f32.mrb[0].mxu0
        %v1079 = vadd.f32 %v589, %v1078
        %v1080 = vpop.f32.mrb[0].mxu0
        %v1081 = vpop.f32.mrb[0].mxu0
        %v1082 = vadd.f32 %v589, %v1081
        %v1083 = vpop.f32.mrb[0].mxu0
        %1084 = vmatprep.mubr.bf16.mxu0 0
        %1085 = vmatmul.mubr.bf16.gmra.mrb[0].mxu0 %v620
        %v1086 = vpop.f32.mrb[0].mxu0
        %v1087 = vadd.f32 %v589, %v1086
        %v1088 = vpop.f32.mrb[0].mxu0
        %v1089 = vpop.f32.mrb[0].mxu0
        %v1090 = vadd.f32 %v589, %v1089
        %v1091 = vpop.f32.mrb[0].mxu0
        %1092 = vmatprep.mubr.bf16.mxu0 0
        %1093 = vmatmul.mubr.bf16.gmra.mrb[0].mxu0 %v623
        %v1094 = vpop.f32.mrb[0].mxu0
        %v1095 = vadd.f32 %v589, %v1094
        %v1096 = vpop.f32.mrb[0].mxu0
        %v1097 = vpop.f32.mrb[0].mxu0
        %v1098 = vadd.f32 %v589, %v1097
        %v1099 = vpop.f32.mrb[0].mxu0
        %1100 = vmatprep.mubr.bf16.mxu0 0
        %1101 = vmatmul.mubr.bf16.gmra.mrb[0].mxu0 %v626
        %v1102 = vpop.f32.mrb[0].mxu0
        %v1103 = vadd.f32 %v589, %v1102
        %v1104 = vpop.f32.mrb[0].mxu0
        %v1105 = vpop.f32.mrb[0].mxu0
        %v1106 = vadd.f32 %v589, %v1105
        %v1107 = vpop.f32.mrb[0].mxu0
        %1108 = vmatprep.mubr.bf16.mxu0 0
        %1109 = vmatmul.mubr.bf16.gmra.mrb[0].mxu0 %v629
        %v1110 = vpop.f32.mrb[0].mxu0
        %v1111 = vadd.f32 %v589, %v1110
        %v1112 = vpop.f32.mrb[0].mxu0
        %v1113 = vpop.f32.mrb[0].mxu0
        %v1114 = vadd.f32 %v589, %v1113
        %v1115 = vpop.f32.mrb[0].mxu0
        %1116 = vmatprep.mubr.bf16.mxu0 0
        %1117 = vmatmul.mubr.bf16.gmra.mrb[0].mxu0 %v632
        %v1118 = vpop.f32.mrb[0].mxu0
        %v1119 = vadd.f32 %v589, %v1118
        %v1120 = vpop.f32.mrb[0].mxu0
        %v1121 = vpop.f32.mrb[0].mxu0
        %v1122 = vadd.f32 %v589, %v1121
        %v1123 = vpop.f32.mrb[0].mxu0
        %1124 = vmatprep.mubr.bf16.mxu0 0
        %1125 = vmatmul.mubr.bf16.gmra.mrb[0].mxu0 %v635
        %v1126 = vpop.f32.mrb[0].mxu0
        %v1127 = vadd.f32 %v589, %v1126
        %v1128 = vpop.f32.mrb[0].mxu0
        %v1129 = vpop.f32.mrb[0].mxu0
        %v1130 = vadd.f32 %v589, %v1129
        %v1131 = vpop.f32.mrb[0].mxu0
        %1132 = vmatprep.mubr.bf16.mxu0 0
        %1133 = vmatmul.mubr.bf16.gmra.mrb[0].mxu0 %v638
        %v1134 = vpop.f32.mrb[0].mxu0
        %v1135 = vadd.f32 %v589, %v1134
        %v1136 = vpop.f32.mrb[0].mxu0
        %v1137 = vpop.f32.mrb[0].mxu0
        %v1138 = vadd.f32 %v589, %v1137
        %v1139 = vpop.f32.mrb[0].mxu0
        %1140 = vmatprep.mubr.bf16.mxu0 0
        %1141 = vmatmul.mubr.bf16.gmra.mrb[0].mxu0 %v641
        %v1142 = vpop.f32.mrb[0].mxu0
        %v1143 = vadd.f32 %v589, %v1142
        %v1144 = vpop.f32.mrb[0].mxu0
        %v1145 = vpop.f32.mrb[0].mxu0
        %v1146 = vadd.f32 %v589, %v1145
        %v1147 = vpop.f32.mrb[0].mxu0
        %1148 = vmatprep.mubr.bf16.mxu0 0
        %1149 = vmatmul.mubr.bf16.gmra.mrb[0].mxu0 %v644
        %v1150 = vpop.f32.mrb[0].mxu0
        %v1151 = vadd.f32 %v589, %v1150
        %v1152 = vpop.f32.mrb[0].mxu0
        %v1153 = vpop.f32.mrb[0].mxu0
        %v1154 = vadd.f32 %v589, %v1153
        %v1155 = vpop.f32.mrb[0].mxu0
        %1156 = vmatprep.mubr.bf16.mxu0 0
        %1157 = vmatmul.mubr.bf16.gmra.mrb[0].mxu0 %v647
        %v1158 = vpop.f32.mrb[0].mxu0
        %v1159 = vadd.f32 %v589, %v1158
        %v1160 = vpop.f32.mrb[0].mxu0
        %v1161 = vpop.f32.mrb[0].mxu0
        %v1162 = vadd.f32 %v589, %v1161
        %v1163 = vpop.f32.mrb[0].mxu0
        %1164 = vmatprep.mubr.bf16.mxu0 0
        %1165 = vmatmul.mubr.bf16.gmra.mrb[0].mxu0 %v650
        %v1166 = vpop.f32.mrb[0].mxu0
        %v1167 = vadd.f32 %v589, %v1166
        %v1168 = vpop.f32.mrb[0].mxu0
        %v1169 = vpop.f32.mrb[0].mxu0
        %v1170 = vadd.f32 %v589, %v1169
        %v1171 = vpop.f32.mrb[0].mxu0
        %1172 = vmatprep.mubr.bf16.mxu0 0
        %1173 = vmatmul.mubr.bf16.gmra.mrb[0].mxu0 %v653
        %v1174 = vpop.f32.mrb[0].mxu0
        %v1175 = vadd.f32 %v589, %v1174
        %v1176 = vpop.f32.mrb[0].mxu0
        %v1177 = vpop.f32.mrb[0].mxu0
        %v1178 = vadd.f32 %v589, %v1177
        %v1179 = vpop.f32.mrb[0].mxu0
        %1180 = vmatprep.mubr.bf16.mxu0 0
        %1181 = vmatmul.mubr.bf16.gmra.mrb[0].mxu0 %v656
        %v1182 = vpop.f32.mrb[0].mxu0
        %v1183 = vadd.f32 %v589, %v1182
        %v1184 = vpop.f32.mrb[0].mxu0
        %v1185 = vpop.f32.mrb[0].mxu0
        %v1186 = vadd.f32 %v589, %v1185
        %v1187 = vpop.f32.mrb[0].mxu0
        %1188 = vmatprep.mubr.bf16.mxu0 0
        %1189 = vmatmul.mubr.bf16.gmra.mrb[0].mxu0 %v659
        %v1190 = vpop.f32.mrb[0].mxu0
        %v1191 = vadd.f32 %v589, %v1190
        %v1192 = vpop.f32.mrb[0].mxu0
        %v1193 = vpop.f32.mrb[0].mxu0
        %v1194 = vadd.f32 %v589, %v1193
        %v1195 = vpop.f32.mrb[0].mxu0
        %1196 = vmatprep.mubr.bf16.mxu0 0
        %1197 = vmatmul.mubr.bf16.gmra.mrb[0].mxu0 %v662
        %v1198 = vpop.f32.mrb[0].mxu0
        %v1199 = vadd.f32 %v589, %v1198
        %v1200 = vpop.f32.mrb[0].mxu0
        %v1201 = vpop.f32.mrb[0].mxu0
        %v1202 = vadd.f32 %v589, %v1201
        %v1203 = vpop.f32.mrb[0].mxu0
        %1204 = vmatprep.mubr.bf16.mxu0 0
        %1205 = vmatmul.mubr.bf16.gmra.mrb[0].mxu0 %v665
        %v1206 = vpop.f32.mrb[0].mxu0
        %v1207 = vadd.f32 %v589, %v1206
        %v1208 = vpop.f32.mrb[0].mxu0
        %v1209 = vpop.f32.mrb[0].mxu0
        %v1210 = vadd.f32 %v589, %v1209
        %v1211 = vpop.f32.mrb[0].mxu0
        %1212 = vmatprep.mubr.bf16.mxu0 0
        %1213 = vmatmul.mubr.bf16.gmra.mrb[0].mxu0 %v668
        %v1214 = vpop.f32.mrb[0].mxu0
        %v1215 = vadd.f32 %v589, %v1214
        %v1216 = vpop.f32.mrb[0].mxu0
        %v1217 = vpop.f32.mrb[0].mxu0
        %v1218 = vadd.f32 %v589, %v1217
        %v1219 = vpop.f32.mrb[0].mxu0
        %1220 = vmatprep.mubr.bf16.mxu0 0
        %1221 = vmatmul.mubr.bf16.gmra.mrb[0].mxu0 %v671
        %v1222 = vpop.f32.mrb[0].mxu0
        %v1223 = vadd.f32 %v589, %v1222
        %v1224 = vpop.f32.mrb[0].mxu0
        %v1225 = vpop.f32.mrb[0].mxu0
        %v1226 = vadd.f32 %v589, %v1225
        %v1227 = vpop.f32.mrb[0].mxu0
        %1228 = vmatprep.mubr.bf16.mxu0 0
        %1229 = vmatmul.mubr.bf16.gmra.mrb[0].mxu0 %v674
        %v1230 = vpop.f32.mrb[0].mxu0
        %v1231 = vadd.f32 %v589, %v1230
        %v1232 = vpop.f32.mrb[0].mxu0
        %v1233 = vpop.f32.mrb[0].mxu0
        %v1234 = vadd.f32 %v589, %v1233
        %v1235 = vpop.f32.mrb[0].mxu0
        %1236 = vmatprep.mubr.bf16.mxu0 0
        %1237 = vmatmul.mubr.bf16.gmra.mrb[0].mxu0 %v677
        %v1238 = vpop.f32.mrb[0].mxu0
        %v1239 = vadd.f32 %v589, %v1238
        %v1240 = vpop.f32.mrb[0].mxu0
        %v1241 = vpop.f32.mrb[0].mxu0
        %v1242 = vadd.f32 %v589, %v1241
        %v1243 = vpop.f32.mrb[0].mxu0
        %1244 = vmatprep.mubr.bf16.mxu0 0
        %1245 = vmatmul.mubr.bf16.gmra.mrb[0].mxu0 %v680
        %v1246 = vpop.f32.mrb[0].mxu0
        %v1247 = vadd.f32 %v589, %v1246
        %v1248 = vpop.f32.mrb[0].mxu0
        %v1249 = vpop.f32.mrb[0].mxu0
        %v1250 = vadd.f32 %v589, %v1249
        %v1251 = vpop.f32.mrb[0].mxu0
        %1252 = vmatprep.mubr.bf16.mxu0 0
        %1253 = vmatmul.mubr.bf16.gmra.mrb[0].mxu0 %v683
        %v1254 = vpop.f32.mrb[0].mxu0
        %v1255 = vadd.f32 %v589, %v1254
        %v1256 = vpop.f32.mrb[0].mxu0
        %v1257 = vpop.f32.mrb[0].mxu0
        %v1258 = vadd.f32 %v589, %v1257
        %v1259 = vpop.f32.mrb[0].mxu0
        %1260 = vmatprep.mubr.bf16.mxu0 0
        %1261 = vmatmul.mubr.bf16.gmra.mrb[0].mxu0 %v686
        %v1262 = vpop.f32.mrb[0].mxu0
        %v1263 = vadd.f32 %v589, %v1262
        %v1264 = vpop.f32.mrb[0].mxu0
        %v1265 = vpop.f32.mrb[0].mxu0
        %v1266 = vadd.f32 %v589, %v1265
        %v1267 = vpop.f32.mrb[0].mxu0
        %1268 = vmatprep.mubr.bf16.mxu0 0
        %1269 = vmatmul.mubr.bf16.gmra.mrb[0].mxu0 %v689
        %v1270 = vpop.f32.mrb[0].mxu0
        %v1271 = vadd.f32 %v589, %v1270
        %v1272 = vpop.f32.mrb[0].mxu0
        %v1273 = vpop.f32.mrb[0].mxu0
        %v1274 = vadd.f32 %v589, %v1273
        %v1275 = vpop.f32.mrb[0].mxu0
        %1276 = vmatprep.mubr.bf16.mxu0 0
        %1277 = vmatmul.mubr.bf16.gmra.mrb[0].mxu0 %v692
        %v1278 = vpop.f32.mrb[0].mxu0
        %v1279 = vadd.f32 %v589, %v1278
        %v1280 = vpop.f32.mrb[0].mxu0
        %v1281 = vpop.f32.mrb[0].mxu0
        %v1282 = vadd.f32 %v589, %v1281
        %v1283 = vpop.f32.mrb[0].mxu0
        %1284 = vmatprep.mubr.bf16.mxu0 0
        %1285 = vmatmul.mubr.bf16.gmra.mrb[0].mxu0 %v695
        %v1286 = vpop.f32.mrb[0].mxu0
        %v1287 = vadd.f32 %v589, %v1286
        %v1288 = vpop.f32.mrb[0].mxu0
        %v1289 = vpop.f32.mrb[0].mxu0
        %v1290 = vadd.f32 %v589, %v1289
        %v1291 = vpop.f32.mrb[0].mxu0
        %1292 = vmatprep.mubr.bf16.mxu0 0
        %1293 = vmatmul.mubr.bf16.gmra.mrb[0].mxu0 %v698
        %v1294 = vpop.f32.mrb[0].mxu0
        %v1295 = vadd.f32 %v589, %v1294
        %v1296 = vpop.f32.mrb[0].mxu0
        %v1297 = vpop.f32.mrb[0].mxu0
        %v1298 = vadd.f32 %v589, %v1297
        %v1299 = vpop.f32.mrb[0].mxu0
        %1300 = vmatprep.mubr.bf16.mxu0 0
        %1301 = vmatmul.mubr.bf16.gmra.mrb[0].mxu0 %v701
        %v1302 = vpop.f32.mrb[0].mxu0
        %v1303 = vadd.f32 %v589, %v1302
        %v1304 = vpop.f32.mrb[0].mxu0
        %v1305 = vpop.f32.mrb[0].mxu0
        %v1306 = vadd.f32 %v589, %v1305
        %v1307 = vpop.f32.mrb[0].mxu0
        %1308 = vmatprep.mubr.bf16.mxu0 0
        %1309 = vmatmul.mubr.bf16.gmra.mrb[0].mxu0 %v704
        %v1310 = vpop.f32.mrb[0].mxu0
        %v1311 = vadd.f32 %v589, %v1310
        %v1312 = vpop.f32.mrb[0].mxu0
        %v1313 = vpop.f32.mrb[0].mxu0
        %v1314 = vadd.f32 %v589, %v1313
        %v1315 = vpop.f32.mrb[0].mxu0
        %1316 = vmatprep.mubr.bf16.mxu0 0
        %1317 = vmatmul.mubr.bf16.gmra.mrb[0].mxu0 %v707
        %v1318 = vpop.f32.mrb[0].mxu0
        %v1319 = vadd.f32 %v589, %v1318
        %v1320 = vpop.f32.mrb[0].mxu0
        %v1321 = vpop.f32.mrb[0].mxu0
        %v1322 = vadd.f32 %v589, %v1321
        %v1323 = vpop.f32.mrb[0].mxu0
        %1324 = vmatprep.mubr.bf16.mxu0 0
        %1325 = vmatmul.mubr.bf16.gmra.mrb[0].mxu0 %v710
        %v1326 = vpop.f32.mrb[0].mxu0
        %v1327 = vadd.f32 %v589, %v1326
        %v1328 = vpop.f32.mrb[0].mxu0
        %v1329 = vpop.f32.mrb[0].mxu0
        %v1330 = vadd.f32 %v589, %v1329
        %v1331 = vpop.f32.mrb[0].mxu0
        %1332 = vmatprep.mubr.bf16.mxu0 0
        %1333 = vmatmul.mubr.bf16.gmra.mrb[0].mxu0 %v713
        %v1334 = vpop.f32.mrb[0].mxu0
        %v1335 = vadd.f32 %v589, %v1334
        %v1336 = vpop.f32.mrb[0].mxu0
        %v1337 = vpop.f32.mrb[0].mxu0
        %v1338 = vadd.f32 %v589, %v1337
        %v1339 = vpop.f32.mrb[0].mxu0
        %1340 = vmatprep.mubr.bf16.mxu0 0
        %1341 = vmatmul.mubr.bf16.gmra.mrb[0].mxu0 %v716
        %v1342 = vpop.f32.mrb[0].mxu0
        %v1343 = vadd.f32 %v589, %v1342
        %v1344 = vpop.f32.mrb[0].mxu0
        %v1345 = vpop.f32.mrb[0].mxu0
        %v1346 = vadd.f32 %v589, %v1345
        %v1347 = vpop.f32.mrb[0].mxu0
        %1348 = vmatprep.mubr.bf16.mxu0 0
        %1349 = vmatmul.mubr.bf16.gmra.mrb[0].mxu0 %v719
        %v1350 = vpop.f32.mrb[0].mxu0
        %v1351 = vadd.f32 %v589, %v1350
        %v1352 = vpop.f32.mrb[0].mxu0
        %v1353 = vpop.f32.mrb[0].mxu0
        %v1354 = vadd.f32 %v589, %v1353
        %v1355 = vpop.f32.mrb[0].mxu0
        %1356 = vmatprep.mubr.bf16.mxu0 0
        %1357 = vmatmul.mubr.bf16.gmra.mrb[0].mxu0 %v722
        %v1358 = vpop.f32.mrb[0].mxu0
        %v1359 = vadd.f32 %v589, %v1358
        %v1360 = vpop.f32.mrb[0].mxu0
        %v1361 = vpop.f32.mrb[0].mxu0
        %v1362 = vadd.f32 %v589, %v1361
        %v1363 = vpop.f32.mrb[0].mxu0
        %1364 = vmatprep.mubr.bf16.mxu0 0
        %1365 = vmatmul.mubr.bf16.gmra.mrb[0].mxu0 %v725
        %v1366 = vpop.f32.mrb[0].mxu0
        %v1367 = vadd.f32 %v589, %v1366
        %v1368 = vpop.f32.mrb[0].mxu0
        %v1369 = vpop.f32.mrb[0].mxu0
        %v1370 = vadd.f32 %v589, %v1369
        %v1371 = vpop.f32.mrb[0].mxu0
        %1372 = vmatprep.mubr.bf16.mxu0 0
        %1373 = vmatmul.mubr.bf16.gmra.mrb[0].mxu0 %v728
        %v1374 = vpop.f32.mrb[0].mxu0
        %v1375 = vadd.f32 %v589, %v1374
        %v1376 = vpop.f32.mrb[0].mxu0
        %v1377 = vpop.f32.mrb[0].mxu0
        %v1378 = vadd.f32 %v589, %v1377
        %v1379 = vpop.f32.mrb[0].mxu0
        %1380 = vmatprep.mubr.bf16.mxu0 0
        %1381 = vmatmul.mubr.bf16.gmra.mrb[0].mxu0 %v731
        %v1382 = vpop.f32.mrb[0].mxu0
        %v1383 = vadd.f32 %v589, %v1382
        %v1384 = vpop.f32.mrb[0].mxu0
        %v1385 = vpop.f32.mrb[0].mxu0
        %v1386 = vadd.f32 %v589, %v1385
        %v1387 = vpop.f32.mrb[0].mxu0
        %1388 = vmatprep.mubr.bf16.mxu0 0
        %1389 = vmatmul.mubr.bf16.gmra.mrb[0].mxu0 %v734
        %v1390 = vpop.f32.mrb[0].mxu0
        %v1391 = vadd.f32 %v589, %v1390
        %v1392 = vpop.f32.mrb[0].mxu0
        %v1393 = vpop.f32.mrb[0].mxu0
        %v1394 = vadd.f32 %v589, %v1393
        %v1395 = vpop.f32.mrb[0].mxu0
        %1396 = vmatprep.mubr.bf16.mxu0 0
        %1397 = vmatmul.mubr.bf16.gmra.mrb[0].mxu0 %v737
        %v1398 = vpop.f32.mrb[0].mxu0
        %v1399 = vadd.f32 %v589, %v1398
        %v1400 = vpop.f32.mrb[0].mxu0
        %v1401 = vpop.f32.mrb[0].mxu0
        %v1402 = vadd.f32 %v589, %v1401
        %v1403 = vpop.f32.mrb[0].mxu0
        %1404 = vmatprep.mubr.bf16.mxu0 0
        %1405 = vmatmul.mubr.bf16.gmra.mrb[0].mxu0 %v740
        %v1406 = vpop.f32.mrb[0].mxu0
        %v1407 = vadd.f32 %v589, %v1406
        %v1408 = vpop.f32.mrb[0].mxu0
        %v1409 = vpop.f32.mrb[0].mxu0
        %v1410 = vadd.f32 %v589, %v1409
        %v1411 = vpop.f32.mrb[0].mxu0
        %1412 = vmatprep.mubr.bf16.mxu0 0
        %1413 = vmatmul.mubr.bf16.gmra.mrb[0].mxu0 %v743
        %v1414 = vpop.f32.mrb[0].mxu0
        %v1415 = vadd.f32 %v589, %v1414
        %v1416 = vpop.f32.mrb[0].mxu0
        %v1417 = vpop.f32.mrb[0].mxu0
        %v1418 = vadd.f32 %v589, %v1417
        %v1419 = vpop.f32.mrb[0].mxu0
        %1420 = vmatprep.mubr.bf16.mxu0 0
        %1421 = vmatmul.mubr.bf16.gmra.mrb[0].mxu0 %v746
        %v1422 = vpop.f32.mrb[0].mxu0
        %v1423 = vadd.f32 %v589, %v1422
        %v1424 = vpop.f32.mrb[0].mxu0
        %v1425 = vpop.f32.mrb[0].mxu0
        %v1426 = vadd.f32 %v589, %v1425
        %v1427 = vpop.f32.mrb[0].mxu0
        %1428 = vmatprep.mubr.bf16.mxu0 0
        %1429 = vmatmul.mubr.bf16.gmra.mrb[0].mxu0 %v749
        %v1430 = vpop.f32.mrb[0].mxu0
        %v1431 = vadd.f32 %v589, %v1430
        %v1432 = vpop.f32.mrb[0].mxu0
        %v1433 = vpop.f32.mrb[0].mxu0
        %v1434 = vadd.f32 %v589, %v1433
        %v1435 = vpop.f32.mrb[0].mxu0
        %1436 = vmatprep.mubr.bf16.mxu0 0
        %1437 = vmatmul.mubr.bf16.gmra.mrb[0].mxu0 %v752
        %v1438 = vpop.f32.mrb[0].mxu0
        %v1439 = vadd.f32 %v589, %v1438
        %v1440 = vpop.f32.mrb[0].mxu0
        %v1441 = vpop.f32.mrb[0].mxu0
        %v1442 = vadd.f32 %v589, %v1441
        %v1443 = vpop.f32.mrb[0].mxu0
        %1444 = vmatprep.mubr.bf16.mxu0 0
        %1445 = vmatmul.mubr.bf16.gmra.mrb[0].mxu0 %v755
        %v1446 = vpop.f32.mrb[0].mxu0
        %v1447 = vadd.f32 %v589, %v1446
        %v1448 = vpop.f32.mrb[0].mxu0
        %v1449 = vpop.f32.mrb[0].mxu0
        %v1450 = vadd.f32 %v589, %v1449
        %v1451 = vpop.f32.mrb[0].mxu0
        %1452 = vmatprep.mubr.bf16.mxu0 0
        %1453 = vmatmul.mubr.bf16.gmra.mrb[0].mxu0 %v758
        %v1454 = vpop.f32.mrb[0].mxu0
        %v1455 = vadd.f32 %v589, %v1454
        %v1456 = vpop.f32.mrb[0].mxu0
        %v1457 = vpop.f32.mrb[0].mxu0
        %v1458 = vadd.f32 %v589, %v1457
        %v1459 = vpop.f32.mrb[0].mxu0
        %1460 = vmatprep.mubr.bf16.mxu0 0
        %1461 = vmatmul.mubr.bf16.gmra.mrb[0].mxu0 %v761
        %v1462 = vpop.f32.mrb[0].mxu0
        %v1463 = vadd.f32 %v589, %v1462
        %v1464 = vpop.f32.mrb[0].mxu0
        %v1465 = vpop.f32.mrb[0].mxu0
        %v1466 = vadd.f32 %v589, %v1465
        %v1467 = vpop.f32.mrb[0].mxu0
        %1468 = vmatprep.mubr.bf16.mxu0 0
        %1469 = vmatmul.mubr.bf16.gmra.mrb[0].mxu0 %v764
        %v1470 = vpop.f32.mrb[0].mxu0
        %v1471 = vadd.f32 %v589, %v1470
        %v1472 = vpop.f32.mrb[0].mxu0
        %v1473 = vpop.f32.mrb[0].mxu0
        %v1474 = vadd.f32 %v589, %v1473
        %v1475 = vpop.f32.mrb[0].mxu0
        %1476 = vmatprep.mubr.bf16.mxu0 0
        %1477 = vmatmul.mubr.bf16.gmra.mrb[0].mxu0 %v767
        %v1478 = vpop.f32.mrb[0].mxu0
        %v1479 = vadd.f32 %v589, %v1478
        %v1480 = vpop.f32.mrb[0].mxu0
        %v1481 = vpop.f32.mrb[0].mxu0
        %v1482 = vadd.f32 %v589, %v1481
        %v1483 = vpop.f32.mrb[0].mxu0
        %1484 = vmatprep.mubr.bf16.mxu0 0
        %1485 = vmatmul.mubr.bf16.gmra.mrb[0].mxu0 %v770
        %v1486 = vpop.f32.mrb[0].mxu0
        %v1487 = vadd.f32 %v589, %v1486
        %v1488 = vpop.f32.mrb[0].mxu0
        %v1489 = vpop.f32.mrb[0].mxu0
        %v1490 = vadd.f32 %v589, %v1489
        %v1491 = vpop.f32.mrb[0].mxu0
        %1492 = vmatprep.mubr.bf16.mxu0 0
        %1493 = vmatmul.mubr.bf16.gmra.mrb[0].mxu0 %v773
        %v1494 = vpop.f32.mrb[0].mxu0
        %v1495 = vadd.f32 %v589, %v1494
        %v1496 = vpop.f32.mrb[0].mxu0
        %v1497 = vpop.f32.mrb[0].mxu0
        %v1498 = vadd.f32 %v589, %v1497
        %v1499 = vpop.f32.mrb[0].mxu0
        %1500 = vmatprep.mubr.bf16.mxu0 0
        %1501 = vmatmul.mubr.bf16.gmra.mrb[0].mxu0 %v776
        %v1502 = vpop.f32.mrb[0].mxu0
        %v1503 = vadd.f32 %v589, %v1502
        %v1504 = vpop.f32.mrb[0].mxu0
        %v1505 = vpop.f32.mrb[0].mxu0
        %v1506 = vadd.f32 %v589, %v1505
        %v1507 = vpop.f32.mrb[0].mxu0
        %1508 = vmatprep.mubr.bf16.mxu0 0
        %1509 = vmatmul.mubr.bf16.gmra.mrb[0].mxu0 %v779
        %v1510 = vpop.f32.mrb[0].mxu0
        %v1511 = vadd.f32 %v589, %v1510
        %v1512 = vpop.f32.mrb[0].mxu0
        %v1513 = vpop.f32.mrb[0].mxu0
        %v1514 = vadd.f32 %v589, %v1513
        %v1515 = vpop.f32.mrb[0].mxu0
        %1516 = vmatprep.mubr.bf16.mxu0 0
        %1517 = vmatmul.mubr.bf16.gmra.mrb[0].mxu0 %v782
        %v1518 = vpop.f32.mrb[0].mxu0
        %v1519 = vadd.f32 %v589, %v1518
        %v1520 = vpop.f32.mrb[0].mxu0
        %v1521 = vpop.f32.mrb[0].mxu0
        %v1522 = vadd.f32 %v589, %v1521
        %v1523 = vpop.f32.mrb[0].mxu0
        %1524 = vmatprep.mubr.bf16.mxu0 0
        %1525 = vmatmul.mubr.bf16.gmra.mrb[0].mxu0 %v785
        %v1526 = vpop.f32.mrb[0].mxu0
        %v1527 = vadd.f32 %v589, %v1526
        %v1528 = vpop.f32.mrb[0].mxu0
        %v1529 = vpop.f32.mrb[0].mxu0
        %v1530 = vadd.f32 %v589, %v1529
        %v1531 = vpop.f32.mrb[0].mxu0
        %1532 = vmatprep.mubr.bf16.mxu0 0
        %1533 = vmatmul.mubr.bf16.gmra.mrb[0].mxu0 %v788
        %v1534 = vpop.f32.mrb[0].mxu0
        %v1535 = vadd.f32 %v589, %v1534
        %v1536 = vpop.f32.mrb[0].mxu0
        %v1537 = vpop.f32.mrb[0].mxu0
        %v1538 = vadd.f32 %v589, %v1537
        %v1539 = vpop.f32.mrb[0].mxu0
        %1540 = vmatprep.mubr.bf16.mxu0 0
        %1541 = vmatmul.mubr.bf16.gmra.mrb[0].mxu0 %v791
        %v1542 = vpop.f32.mrb[0].mxu0
        %v1543 = vadd.f32 %v589, %v1542
        %v1544 = vpop.f32.mrb[0].mxu0
        %v1545 = vpop.f32.mrb[0].mxu0
        %v1546 = vadd.f32 %v589, %v1545
        %v1547 = vpop.f32.mrb[0].mxu0
        %1548 = vmatprep.mubr.bf16.mxu0 0
        %1549 = vmatmul.mubr.bf16.gmra.mrb[0].mxu0 %v794
        %v1550 = vpop.f32.mrb[0].mxu0
        %v1551 = vadd.f32 %v589, %v1550
        %v1552 = vpop.f32.mrb[0].mxu0
        %v1553 = vpop.f32.mrb[0].mxu0
        %v1554 = vadd.f32 %v589, %v1553
        %v1555 = vpop.f32.mrb[0].mxu0
        %1556 = vmatprep.mubr.bf16.mxu0 0
        %1557 = vmatmul.mubr.bf16.gmra.mrb[0].mxu0 %v797
        %v1558 = vpop.f32.mrb[0].mxu0
        %v1559 = vadd.f32 %v589, %v1558
        %v1560 = vpop.f32.mrb[0].mxu0
        %v1561 = vpop.f32.mrb[0].mxu0
        %v1562 = vadd.f32 %v589, %v1561
        %v1563 = vpop.f32.mrb[0].mxu0
        %1564 = vmatprep.mubr.bf16.mxu0 0
        %1565 = vmatmul.mubr.bf16.gmra.mrb[0].mxu0 %v800
        %v1566 = vpop.f32.mrb[0].mxu0
        %v1567 = vadd.f32 %v589, %v1566
        %v1568 = vpop.f32.mrb[0].mxu0
        %v1569 = vpop.f32.mrb[0].mxu0
        %v1570 = vadd.f32 %v589, %v1569
        %v1571 = vpop.f32.mrb[0].mxu0
        %1572 = vmatprep.mubr.bf16.mxu0 0
        %1573 = vmatmul.mubr.bf16.gmra.mrb[0].mxu0 %v803
        %v1574 = vpop.f32.mrb[0].mxu0
        %v1575 = vadd.f32 %v589, %v1574
        %v1576 = vpop.f32.mrb[0].mxu0
        %v1577 = vpop.f32.mrb[0].mxu0
        %v1578 = vadd.f32 %v589, %v1577
        %v1579 = vpop.f32.mrb[0].mxu0
        %1580 = vmatprep.mubr.bf16.mxu0 0
        %1581 = vmatmul.mubr.bf16.gmra.mrb[0].mxu0 %v806
        %v1582 = vpop.f32.mrb[0].mxu0
        %v1583 = vadd.f32 %v589, %v1582
        %v1584 = vpop.f32.mrb[0].mxu0
        %v1585 = vpop.f32.mrb[0].mxu0
        %v1586 = vadd.f32 %v589, %v1585
        %v1587 = vpop.f32.mrb[0].mxu0
        %1588 = vmatprep.mubr.bf16.mxu0 0
        %1589 = vmatmul.mubr.bf16.gmra.mrb[0].mxu0 %v809
        %v1590 = vpop.f32.mrb[0].mxu0
        %v1591 = vadd.f32 %v589, %v1590
        %v1592 = vpop.f32.mrb[0].mxu0
        %v1593 = vpop.f32.mrb[0].mxu0
        %v1594 = vadd.f32 %v589, %v1593
        %v1595 = vpop.f32.mrb[0].mxu0
        %1596 = vmatprep.mubr.bf16.mxu0 0
        %1597 = vmatmul.mubr.bf16.gmra.mrb[0].mxu0 %v812
        %v1598 = vpop.f32.mrb[0].mxu0
        %v1599 = vadd.f32 %v589, %v1598
        %v1600 = vpop.f32.mrb[0].mxu0
        %v1601 = vpop.f32.mrb[0].mxu0
        %v1602 = vadd.f32 %v589, %v1601
        %v1603 = vpop.f32.mrb[0].mxu0
        %1604 = vmatprep.mubr.bf16.mxu0 0
        %1605 = vmatmul.mubr.bf16.gmra.mrb[0].mxu0 %v815
        %v1606 = vpop.f32.mrb[0].mxu0
        %v1607 = vadd.f32 %v589, %v1606
        %v1608 = vpop.f32.mrb[0].mxu0
        %v1609 = vpop.f32.mrb[0].mxu0
        %v1610 = vadd.f32 %v589, %v1609
        %v1611 = vpop.f32.mrb[0].mxu0
        %1612 = vmatprep.mubr.bf16.mxu0 0
        %1613 = vmatmul.mubr.bf16.gmra.mrb[0].mxu0 %v818
        %v1614 = vpop.f32.mrb[0].mxu0
        %v1615 = vadd.f32 %v589, %v1614
        %v1616 = vpop.f32.mrb[0].mxu0
        %v1617 = vpop.f32.mrb[0].mxu0
        %v1618 = vadd.f32 %v589, %v1617
        %v1619 = vpop.f32.mrb[0].mxu0
        %1620 = vmatprep.mubr.bf16.mxu0 0
        %1621 = vmatmul.mubr.bf16.gmra.mrb[0].mxu0 %v821
        %v1622 = vpop.f32.mrb[0].mxu0
        %v1623 = vadd.f32 %v589, %v1622
        %v1624 = vpop.f32.mrb[0].mxu0
        %v1625 = vpop.f32.mrb[0].mxu0
        %v1626 = vadd.f32 %v589, %v1625
        %v1627 = vpop.f32.mrb[0].mxu0
        %1628 = vmatprep.mubr.bf16.mxu0 0
        %1629 = vmatmul.mubr.bf16.gmra.mrb[0].mxu0 %v824
        %v1630 = vpop.f32.mrb[0].mxu0
        %v1631 = vadd.f32 %v589, %v1630
        %v1632 = vpop.f32.mrb[0].mxu0
        %v1633 = vpop.f32.mrb[0].mxu0
        %v1634 = vadd.f32 %v589, %v1633
        %v1635 = vpop.f32.mrb[0].mxu0
        %1636 = vmatprep.mubr.bf16.mxu0 0
        %1637 = vmatmul.mubr.bf16.gmra.mrb[0].mxu0 %v827
        %v1638 = vpop.f32.mrb[0].mxu0
        %v1639 = vadd.f32 %v589, %v1638
        %v1640 = vpop.f32.mrb[0].mxu0
        %v1641 = vpop.f32.mrb[0].mxu0
        %v1642 = vadd.f32 %v589, %v1641
        %v1643 = vpop.f32.mrb[0].mxu0
        %1644 = vmatprep.mubr.bf16.mxu0 0
        %1645 = vmatmul.mubr.bf16.gmra.mrb[0].mxu0 %v830
        %v1646 = vpop.f32.mrb[0].mxu0
        %v1647 = vadd.f32 %v589, %v1646
        %v1648 = vpop.f32.mrb[0].mxu0
        %v1649 = vpop.f32.mrb[0].mxu0
        %v1650 = vadd.f32 %v589, %v1649
        %v1651 = vpop.f32.mrb[0].mxu0
        %1652 = vmatprep.mubr.bf16.mxu0 0
        %1653 = vmatmul.mubr.bf16.gmra.mrb[0].mxu0 %v833
        %v1654 = vpop.f32.mrb[0].mxu0
        %v1655 = vadd.f32 %v589, %v1654
        %v1656 = vpop.f32.mrb[0].mxu0
        %v1657 = vpop.f32.mrb[0].mxu0
        %v1658 = vadd.f32 %v589, %v1657
        %v1659 = vpop.f32.mrb[0].mxu0
        %1660 = vmatprep.mubr.bf16.mxu0 0
        %1661 = vmatmul.mubr.bf16.gmra.mrb[0].mxu0 %v836
        %v1662 = vpop.f32.mrb[0].mxu0
        %v1663 = vadd.f32 %v589, %v1662
        %v1664 = vpop.f32.mrb[0].mxu0
        %v1665 = vpop.f32.mrb[0].mxu0
        %v1666 = vadd.f32 %v589, %v1665
        %v1667 = vpop.f32.mrb[0].mxu0
        %1668 = vmatprep.mubr.bf16.mxu0 0
        %1669 = vmatmul.mubr.bf16.gmra.mrb[0].mxu0 %v839
        %v1670 = vpop.f32.mrb[0].mxu0
        %v1671 = vadd.f32 %v589, %v1670
        %v1672 = vpop.f32.mrb[0].mxu0
        %v1673 = vpop.f32.mrb[0].mxu0
        %v1674 = vadd.f32 %v589, %v1673
        %v1675 = vpop.f32.mrb[0].mxu0
        %1676 = vmatprep.mubr.bf16.mxu0 0
        %1677 = vmatmul.mubr.bf16.gmra.mrb[0].mxu0 %v842
        %v1678 = vpop.f32.mrb[0].mxu0
        %v1679 = vadd.f32 %v589, %v1678
        %v1680 = vpop.f32.mrb[0].mxu0
        %v1681 = vpop.f32.mrb[0].mxu0
        %v1682 = vadd.f32 %v589, %v1681
        %v1683 = vpop.f32.mrb[0].mxu0
        %1684 = vmatprep.mubr.bf16.mxu0 0
        %1685 = vmatmul.mubr.bf16.gmra.mrb[0].mxu0 %v845
        %v1686 = vpop.f32.mrb[0].mxu0
        %v1687 = vadd.f32 %v589, %v1686
        %v1688 = vpop.f32.mrb[0].mxu0
        %v1689 = vpop.f32.mrb[0].mxu0
        %v1690 = vadd.f32 %v589, %v1689
        %v1691 = vpop.f32.mrb[0].mxu0
        %1692 = vmatprep.mubr.bf16.mxu0 0
        %1693 = vmatmul.mubr.bf16.gmra.mrb[0].mxu0 %v848
        %v1694 = vpop.f32.mrb[0].mxu0
        %v1695 = vadd.f32 %v589, %v1694
        %v1696 = vpop.f32.mrb[0].mxu0
        %v1697 = vpop.f32.mrb[0].mxu0
        %v1698 = vadd.f32 %v589, %v1697
        %v1699 = vpop.f32.mrb[0].mxu0
        %1700 = vmatprep.mubr.bf16.mxu0 0
        %1701 = vmatmul.mubr.bf16.gmra.mrb[0].mxu0 %v851
        %v1702 = vpop.f32.mrb[0].mxu0
        %v1703 = vadd.f32 %v589, %v1702
        %v1704 = vpop.f32.mrb[0].mxu0
        %v1705 = vpop.f32.mrb[0].mxu0
        %v1706 = vadd.f32 %v589, %v1705
        %v1707 = vpop.f32.mrb[0].mxu0
        %1708 = vmatprep.mubr.bf16.mxu0 0
        %1709 = vmatmul.mubr.bf16.gmra.mrb[0].mxu0 %v854
        %v1710 = vpop.f32.mrb[0].mxu0
        %v1711 = vadd.f32 %v589, %v1710
        %v1712 = vpop.f32.mrb[0].mxu0
        %v1713 = vpop.f32.mrb[0].mxu0
        %v1714 = vadd.f32 %v589, %v1713
        %v1715 = vpop.f32.mrb[0].mxu0
        %1716 = vmatprep.mubr.bf16.mxu0 0
        %1717 = vmatmul.mubr.bf16.gmra.mrb[0].mxu0 %v857
        %v1718 = vpop.f32.mrb[0].mxu0
        %v1719 = vadd.f32 %v589, %v1718
        %v1720 = vpop.f32.mrb[0].mxu0
        %v1721 = vpop.f32.mrb[0].mxu0
        %v1722 = vadd.f32 %v589, %v1721
        %v1723 = vpop.f32.mrb[0].mxu0
        %1724 = vmatprep.mubr.bf16.mxu0 0
        %1725 = vmatmul.mubr.bf16.gmra.mrb[0].mxu0 %v860
        %v1726 = vpop.f32.mrb[0].mxu0
        %v1727 = vadd.f32 %v589, %v1726
        %v1728 = vpop.f32.mrb[0].mxu0
        %v1729 = vpop.f32.mrb[0].mxu0
        %v1730 = vadd.f32 %v589, %v1729
        %v1731 = vpop.f32.mrb[0].mxu0
        %1732 = vmatprep.mubr.bf16.mxu0 0
        %1733 = vmatmul.mubr.bf16.gmra.mrb[0].mxu0 %v863
        %v1734 = vpop.f32.mrb[0].mxu0
        %v1735 = vadd.f32 %v589, %v1734
        %v1736 = vpop.f32.mrb[0].mxu0
        %v1737 = vpop.f32.mrb[0].mxu0
        %v1738 = vadd.f32 %v589, %v1737
        %v1739 = vpop.f32.mrb[0].mxu0
        %1740 = vmatprep.mubr.bf16.mxu0 0
        %1741 = vmatmul.mubr.bf16.gmra.mrb[0].mxu0 %v866
        %v1742 = vpop.f32.mrb[0].mxu0
        %v1743 = vadd.f32 %v589, %v1742
        %v1744 = vpop.f32.mrb[0].mxu0
        %v1745 = vpop.f32.mrb[0].mxu0
        %v1746 = vadd.f32 %v589, %v1745
        %v1747 = vpop.f32.mrb[0].mxu0
        %1748 = vmatprep.mubr.bf16.mxu0 0
        %1749 = vmatmul.mubr.bf16.gmra.mrb[0].mxu0 %v869
        %v1750 = vpop.f32.mrb[0].mxu0
        %v1751 = vadd.f32 %v589, %v1750
        %v1752 = vpop.f32.mrb[0].mxu0
        %v1753 = vpop.f32.mrb[0].mxu0
        %v1754 = vadd.f32 %v589, %v1753
        %v1755 = vpop.f32.mrb[0].mxu0
        %1756 = vmatprep.mubr.bf16.mxu0 0
        %1757 = vmatmul.mubr.bf16.gmra.mrb[0].mxu0 %v872
        %v1758 = vpop.f32.mrb[0].mxu0
        %v1759 = vadd.f32 %v589, %v1758
        %v1760 = vpop.f32.mrb[0].mxu0
        %v1761 = vpop.f32.mrb[0].mxu0
        %v1762 = vadd.f32 %v589, %v1761
        %v1763 = vpop.f32.mrb[0].mxu0
        %1764 = vmatprep.mubr.bf16.mxu0 0
        %1765 = vmatmul.mubr.bf16.gmra.mrb[0].mxu0 %v875
        %v1766 = vpop.f32.mrb[0].mxu0
        %v1767 = vadd.f32 %v589, %v1766
        %v1768 = vpop.f32.mrb[0].mxu0
        %v1769 = vpop.f32.mrb[0].mxu0
        %v1770 = vadd.f32 %v589, %v1769
        %v1771 = vpop.f32.mrb[0].mxu0
        %1772 = vmatprep.mubr.bf16.mxu0 0
        %1773 = vmatmul.mubr.bf16.gmra.mrb[0].mxu0 %v878
        %v1774 = vpop.f32.mrb[0].mxu0
        %v1775 = vadd.f32 %v589, %v1774
        %v1776 = vpop.f32.mrb[0].mxu0
        %v1777 = vpop.f32.mrb[0].mxu0
        %v1778 = vadd.f32 %v589, %v1777
        %v1779 = vpop.f32.mrb[0].mxu0
        %1780 = vmatprep.mubr.bf16.mxu0 0
        %1781 = vmatmul.mubr.bf16.gmra.mrb[0].mxu0 %v881
        %v1782 = vpop.f32.mrb[0].mxu0
        %v1783 = vadd.f32 %v589, %v1782
        %v1784 = vpop.f32.mrb[0].mxu0
        %v1785 = vpop.f32.mrb[0].mxu0
        %v1786 = vadd.f32 %v589, %v1785
        %v1787 = vpop.f32.mrb[0].mxu0
        %1788 = vmatprep.mubr.bf16.mxu0 0
        %1789 = vmatmul.mubr.bf16.gmra.mrb[0].mxu0 %v884
        %v1790 = vpop.f32.mrb[0].mxu0
        %v1791 = vadd.f32 %v589, %v1790
        %v1792 = vpop.f32.mrb[0].mxu0
        %v1793 = vpop.f32.mrb[0].mxu0
        %v1794 = vadd.f32 %v589, %v1793
        %v1795 = vpop.f32.mrb[0].mxu0
        %1796 = vmatprep.mubr.bf16.mxu0 0
        %1797 = vmatmul.mubr.bf16.gmra.mrb[0].mxu0 %v887
        %v1798 = vpop.f32.mrb[0].mxu0
        %v1799 = vadd.f32 %v589, %v1798
        %v1800 = vpop.f32.mrb[0].mxu0
        %v1801 = vpop.f32.mrb[0].mxu0
        %v1802 = vadd.f32 %v589, %v1801
        %v1803 = vpop.f32.mrb[0].mxu0
        %1804 = vmatprep.mubr.bf16.mxu0 0
        %1805 = vmatmul.mubr.bf16.gmra.mrb[0].mxu0 %v890
        %v1806 = vpop.f32.mrb[0].mxu0
        %v1807 = vadd.f32 %v589, %v1806
        %v1808 = vpop.f32.mrb[0].mxu0
        %v1809 = vpop.f32.mrb[0].mxu0
        %v1810 = vadd.f32 %v589, %v1809
        %v1811 = vpop.f32.mrb[0].mxu0
        %1812 = vmatprep.mubr.bf16.mxu0 0
        %1813 = vmatmul.mubr.bf16.gmra.mrb[0].mxu0 %v893
        %v1814 = vpop.f32.mrb[0].mxu0
        %v1815 = vadd.f32 %v589, %v1814
        %v1816 = vpop.f32.mrb[0].mxu0
        %v1817 = vpop.f32.mrb[0].mxu0
        %v1818 = vadd.f32 %v589, %v1817
        %v1819 = vpop.f32.mrb[0].mxu0
        %1820 = vmatprep.mubr.bf16.mxu0 0
        %1821 = vmatmul.mubr.bf16.gmra.mrb[0].mxu0 %v896
        %v1822 = vpop.f32.mrb[0].mxu0
        %v1823 = vadd.f32 %v589, %v1822
        %v1824 = vpop.f32.mrb[0].mxu0
        %v1825 = vpop.f32.mrb[0].mxu0
        %v1826 = vadd.f32 %v589, %v1825
        %v1827 = vpop.f32.mrb[0].mxu0
        %1828 = vmatprep.mubr.bf16.mxu0 0
        %1829 = vmatmul.mubr.bf16.gmra.mrb[0].mxu0 %v899
        %v1830 = vpop.f32.mrb[0].mxu0
        %v1831 = vadd.f32 %v589, %v1830
        %v1832 = vpop.f32.mrb[0].mxu0
        %v1833 = vpop.f32.mrb[0].mxu0
        %v1834 = vadd.f32 %v589, %v1833
        %v1835 = vpop.f32.mrb[0].mxu0
        %1836 = vmatprep.mubr.bf16.mxu0 0
        %1837 = vmatmul.mubr.bf16.gmra.mrb[0].mxu0 %v902
        %v1838 = vpop.f32.mrb[0].mxu0
        %v1839 = vadd.f32 %v589, %v1838
        %v1840 = vpop.f32.mrb[0].mxu0
        %v1841 = vpop.f32.mrb[0].mxu0
        %v1842 = vadd.f32 %v589, %v1841
        %v1843 = vpop.f32.mrb[0].mxu0
        %1844 = vmatprep.mubr.bf16.mxu0 0
        %1845 = vmatmul.mubr.bf16.gmra.mrb[0].mxu0 %v905
        %v1846 = vpop.f32.mrb[0].mxu0
        %v1847 = vadd.f32 %v589, %v1846
        %v1848 = vpop.f32.mrb[0].mxu0
        %v1849 = vpop.f32.mrb[0].mxu0
        %v1850 = vadd.f32 %v589, %v1849
        %v1851 = vpop.f32.mrb[0].mxu0
        %1852 = vmatprep.mubr.bf16.mxu0 0
        %1853 = vmatmul.mubr.bf16.gmra.mrb[0].mxu0 %v908
        %v1854 = vpop.f32.mrb[0].mxu0
        %v1855 = vadd.f32 %v589, %v1854
        %v1856 = vpop.f32.mrb[0].mxu0
        %v1857 = vpop.f32.mrb[0].mxu0
        %v1858 = vadd.f32 %v589, %v1857
        %v1859 = vpop.f32.mrb[0].mxu0
        %1860 = vmatprep.mubr.bf16.mxu0 0
        %1861 = vmatmul.mubr.bf16.gmra.mrb[0].mxu0 %v911
        %v1862 = vpop.f32.mrb[0].mxu0
        %v1863 = vadd.f32 %v589, %v1862
        %v1864 = vpop.f32.mrb[0].mxu0
        %v1865 = vpop.f32.mrb[0].mxu0
        %v1866 = vadd.f32 %v589, %v1865
        %v1867 = vpop.f32.mrb[0].mxu0
        %1868 = vmatprep.mubr.bf16.mxu0 0
        %1869 = vmatmul.mubr.bf16.gmra.mrb[0].mxu0 %v914
        %v1870 = vpop.f32.mrb[0].mxu0
        %v1871 = vadd.f32 %v589, %v1870
        %v1872 = vpop.f32.mrb[0].mxu0
        %v1873 = vpop.f32.mrb[0].mxu0
        %v1874 = vadd.f32 %v589, %v1873
        %v1875 = vpop.f32.mrb[0].mxu0
        %1876 = vmatprep.mubr.bf16.mxu0 0
        %1877 = vmatmul.mubr.bf16.gmra.mrb[0].mxu0 %v917
        %v1878 = vpop.f32.mrb[0].mxu0
        %v1879 = vadd.f32 %v589, %v1878
        %v1880 = vpop.f32.mrb[0].mxu0
        %v1881 = vpop.f32.mrb[0].mxu0
        %v1882 = vadd.f32 %v589, %v1881
        %v1883 = vpop.f32.mrb[0].mxu0
        %1884 = vmatprep.mubr.bf16.mxu0 0
        %1885 = vmatmul.mubr.bf16.gmra.mrb[0].mxu0 %v920
        %v1886 = vpop.f32.mrb[0].mxu0
        %v1887 = vadd.f32 %v589, %v1886
        %v1888 = vpop.f32.mrb[0].mxu0
        %v1889 = vpop.f32.mrb[0].mxu0
        %v1890 = vadd.f32 %v589, %v1889
        %v1891 = vpop.f32.mrb[0].mxu0
        %1892 = vmatprep.mubr.bf16.mxu0 0
        %1893 = vmatmul.mubr.bf16.gmra.mrb[0].mxu0 %v923
        %v1894 = vpop.f32.mrb[0].mxu0
        %v1895 = vadd.f32 %v589, %v1894
        %v1896 = vpop.f32.mrb[0].mxu0
        %v1897 = vpop.f32.mrb[0].mxu0
        %v1898 = vadd.f32 %v589, %v1897
        %v1899 = vpop.f32.mrb[0].mxu0
        %1900 = vmatprep.mubr.bf16.mxu0 0
        %1901 = vmatmul.mubr.bf16.gmra.mrb[0].mxu0 %v926
        %v1902 = vpop.f32.mrb[0].mxu0
        %v1903 = vadd.f32 %v589, %v1902
        %v1904 = vpop.f32.mrb[0].mxu0
        %v1905 = vpop.f32.mrb[0].mxu0
        %v1906 = vadd.f32 %v589, %v1905
        %v1907 = vpop.f32.mrb[0].mxu0
        %1908 = vmatprep.mubr.bf16.mxu0 0
        %1909 = vmatmul.mubr.bf16.gmra.mrb[0].mxu0 %v929
        %v1910 = vpop.f32.mrb[0].mxu0
        %v1911 = vadd.f32 %v589, %v1910
        %v1912 = vpop.f32.mrb[0].mxu0
        %v1913 = vpop.f32.mrb[0].mxu0
        %v1914 = vadd.f32 %v589, %v1913
        %v1915 = vpop.f32.mrb[0].mxu0
        %1916 = vmatprep.mubr.bf16.mxu0 0
        %1917 = vmatmul.mubr.bf16.gmra.mrb[0].mxu0 %v932
        %v1918 = vpop.f32.mrb[0].mxu0
        %v1919 = vadd.f32 %v589, %v1918
        %v1920 = vpop.f32.mrb[0].mxu0
        %v1921 = vpop.f32.mrb[0].mxu0
        %v1922 = vadd.f32 %v589, %v1921
        %v1923 = vpop.f32.mrb[0].mxu0
        %1924 = vmatprep.mubr.bf16.mxu0 0
        %1925 = vmatmul.mubr.bf16.gmra.mrb[0].mxu0 %v935
        %v1926 = vpop.f32.mrb[0].mxu0
        %v1927 = vadd.f32 %v589, %v1926
        %v1928 = vpop.f32.mrb[0].mxu0
        %v1929 = vpop.f32.mrb[0].mxu0
        %v1930 = vadd.f32 %v589, %v1929
        %v1931 = vpop.f32.mrb[0].mxu0
        %1932 = vmatprep.mubr.bf16.mxu0 0
        %1933 = vmatmul.mubr.bf16.gmra.mrb[0].mxu0 %v938
        %v1934 = vpop.f32.mrb[0].mxu0
        %v1935 = vadd.f32 %v589, %v1934
        %v1936 = vpop.f32.mrb[0].mxu0
        %v1937 = vpop.f32.mrb[0].mxu0
        %v1938 = vadd.f32 %v589, %v1937
        %v1939 = vpop.f32.mrb[0].mxu0
        %1940 = vmatprep.mubr.bf16.mxu0 0
        %1941 = vmatmul.mubr.bf16.gmra.mrb[0].mxu0 %v941
        %v1942 = vpop.f32.mrb[0].mxu0
        %v1943 = vadd.f32 %v589, %v1942
        %v1944 = vpop.f32.mrb[0].mxu0
        %v1945 = vpop.f32.mrb[0].mxu0
        %v1946 = vadd.f32 %v589, %v1945
        %v1947 = vpop.f32.mrb[0].mxu0
        %1948 = vmatprep.mubr.bf16.mxu0 0
        %1949 = vmatmul.mubr.bf16.gmra.mrb[0].mxu0 %v944
        %v1950 = vpop.f32.mrb[0].mxu0
        %v1951 = vadd.f32 %v589, %v1950
        %v1952 = vpop.f32.mrb[0].mxu0
        %v1953 = vpop.f32.mrb[0].mxu0
        %v1954 = vadd.f32 %v589, %v1953
        %v1955 = vpop.f32.mrb[0].mxu0
        %1956 = vmatprep.mubr.bf16.mxu0 0
        %1957 = vmatmul.mubr.bf16.gmra.mrb[0].mxu0 %v947
        %v1958 = vpop.f32.mrb[0].mxu0
        %v1959 = vadd.f32 %v589, %v1958
        %v1960 = vpop.f32.mrb[0].mxu0
        %v1961 = vpop.f32.mrb[0].mxu0
        %v1962 = vadd.f32 %v589, %v1961
        %v1963 = vpop.f32.mrb[0].mxu0
        %1964 = vmatprep.mubr.bf16.mxu0 0
        %1965 = vmatmul.mubr.bf16.gmra.mrb[0].mxu0 %v950
        %v1966 = vpop.f32.mrb[0].mxu0
        %v1967 = vadd.f32 %v589, %v1966
        %v1968 = vpop.f32.mrb[0].mxu0
        %v1969 = vpop.f32.mrb[0].mxu0
        %v1970 = vadd.f32 %v589, %v1969
        %v1971 = vpop.f32.mrb[0].mxu0
        %1972 = vmatprep.mubr.bf16.mxu0 0
        %1973 = vmatmul.mubr.bf16.gmra.mrb[0].mxu0 %v953
        %v1974 = vpop.f32.mrb[0].mxu0
        %v1975 = vadd.f32 %v589, %v1974
        %v1976 = vpop.f32.mrb[0].mxu0
        %v1977 = vpop.f32.mrb[0].mxu0
        %v1978 = vadd.f32 %v589, %v1977
        %v1979 = vpop.f32.mrb[0].mxu0
        %1980 = vmatprep.mubr.bf16.mxu0 0
        %1981 = vmatmul.mubr.bf16.gmra.mrb[0].mxu0 %v956
        %v1982 = vpop.f32.mrb[0].mxu0
        %v1983 = vadd.f32 %v589, %v1982
        %v1984 = vpop.f32.mrb[0].mxu0
        %v1985 = vpop.f32.mrb[0].mxu0
        %v1986 = vadd.f32 %v589, %v1985
        %v1987 = vpop.f32.mrb[0].mxu0
        %1988 = vmatprep.mubr.bf16.mxu0 0
        %1989 = vmatmul.mubr.bf16.gmra.mrb[0].mxu0 %v959
        %v1990 = vpop.f32.mrb[0].mxu0
        %v1991 = vadd.f32 %v589, %v1990
        %v1992 = vpop.f32.mrb[0].mxu0
        %v1993 = vpop.f32.mrb[0].mxu0
        %v1994 = vadd.f32 %v589, %v1993
        %v1995 = vpop.f32.mrb[0].mxu0
        %1996 = vmatprep.mubr.bf16.mxu0 0
        %1997 = vmatmul.mubr.bf16.gmra.mrb[0].mxu0 %v962
        %v1998 = vpop.f32.mrb[0].mxu0
        %v1999 = vadd.f32 %v589, %v1998
        %v2000 = vpop.f32.mrb[0].mxu0
        %v2001 = vpop.f32.mrb[0].mxu0
        %v2002 = vadd.f32 %v589, %v2001
        %v2003 = vpop.f32.mrb[0].mxu0
        %2004 = vmatprep.mubr.bf16.mxu0 0
        %2005 = vmatmul.mubr.bf16.gmra.mrb[0].mxu0 %v965
        %v2006 = vpop.f32.mrb[0].mxu0
        %v2007 = vadd.f32 %v589, %v2006
        %v2008 = vpop.f32.mrb[0].mxu0
        %v2009 = vpop.f32.mrb[0].mxu0
        %v2010 = vadd.f32 %v589, %v2009
        %v2011 = vpop.f32.mrb[0].mxu0
        %2012 = vmatprep.mubr.bf16.mxu0 0
        %2013 = vmatmul.mubr.bf16.gmra.mrb[0].mxu0 %v968
        %v2014 = vpop.f32.mrb[0].mxu0
        %v2015 = vadd.f32 %v589, %v2014
        %v2016 = vpop.f32.mrb[0].mxu0
        %v2017 = vpop.f32.mrb[0].mxu0
        %v2018 = vadd.f32 %v589, %v2017
        %v2019 = vpop.f32.mrb[0].mxu0
        %2020 = vmatprep.mubr.bf16.mxu0 0
        %2021 = vmatmul.mubr.bf16.gmra.mrb[0].mxu0 %v971
        %v2022 = vpop.f32.mrb[0].mxu0
        %v2023 = vadd.f32 %v589, %v2022
        %v2024 = vpop.f32.mrb[0].mxu0
        %v2025 = vpop.f32.mrb[0].mxu0
        %v2026 = vadd.f32 %v589, %v2025
        %v2027 = vpop.f32.mrb[0].mxu0
        %2028 = vmatprep.mubr.bf16.mxu0 0
        %2029 = vmatmul.mubr.bf16.gmra.mrb[0].mxu0 %v974
        %v2030 = vpop.f32.mrb[0].mxu0
        %v2031 = vadd.f32 %v589, %v2030
        %v2032 = vpop.f32.mrb[0].mxu0
        %v2033 = vpop.f32.mrb[0].mxu0
        %v2034 = vadd.f32 %v589, %v2033
        %v2035 = vpop.f32.mrb[0].mxu0
        %2036 = vdwg.mxu0
        %v2037 = vmax.f32 %v1015, 0.0
        %v2038 = vmax.f32 %v1018, 0.0
        %v2039 = vmax.f32 %v1023, 0.0
        %v2040 = vmax.f32 %v1026, 0.0
        %v2041 = vmax.f32 %v1031, 0.0
        %v2042 = vmax.f32 %v1034, 0.0
        %v2043 = vmax.f32 %v1039, 0.0
        %v2044 = vmax.f32 %v1042, 0.0
        %v2045 = vmax.f32 %v1047, 0.0
        %v2046 = vmax.f32 %v1050, 0.0
        %v2047 = vmax.f32 %v1055, 0.0
        %v2048 = vmax.f32 %v1058, 0.0
        %v2049 = vmax.f32 %v1063, 0.0
        %v2050 = vmax.f32 %v1066, 0.0
        %v2051 = vmax.f32 %v1071, 0.0
        %v2052 = vmax.f32 %v1074, 0.0
        %v2053 = vmax.f32 %v1079, 0.0
        %v2054 = vmax.f32 %v1082, 0.0
        %v2055 = vmax.f32 %v1087, 0.0
        %v2056 = vmax.f32 %v1090, 0.0
        %v2057 = vmax.f32 %v1095, 0.0
        %v2058 = vmax.f32 %v1098, 0.0
        %v2059 = vmax.f32 %v1103, 0.0
        %v2060 = vmax.f32 %v1106, 0.0
        %v2061 = vmax.f32 %v1111, 0.0
        %v2062 = vmax.f32 %v1114, 0.0
        %v2063 = vmax.f32 %v1119, 0.0
        %v2064 = vmax.f32 %v1122, 0.0
        %v2065 = vmax.f32 %v1127, 0.0
        %v2066 = vmax.f32 %v1130, 0.0
        %v2067 = vmax.f32 %v1135, 0.0
        %v2068 = vmax.f32 %v1138, 0.0
        %v2069 = vmax.f32 %v1143, 0.0
        %v2070 = vmax.f32 %v1146, 0.0
        %v2071 = vmax.f32 %v1151, 0.0
        %v2072 = vmax.f32 %v1154, 0.0
        %v2073 = vmax.f32 %v1159, 0.0
        %v2074 = vmax.f32 %v1162, 0.0
        %v2075 = vmax.f32 %v1167, 0.0
        %v2076 = vmax.f32 %v1170, 0.0
        %v2077 = vmax.f32 %v1175, 0.0
        %v2078 = vmax.f32 %v1178, 0.0
        %v2079 = vmax.f32 %v1183, 0.0
        %v2080 = vmax.f32 %v1186, 0.0
        %v2081 = vmax.f32 %v1191, 0.0
        %v2082 = vmax.f32 %v1194, 0.0
        %v2083 = vmax.f32 %v1199, 0.0
        %v2084 = vmax.f32 %v1202, 0.0
        %v2085 = vmax.f32 %v1207, 0.0
        %v2086 = vmax.f32 %v1210, 0.0
        %v2087 = vmax.f32 %v1215, 0.0
        %v2088 = vmax.f32 %v1218, 0.0
        %v2089 = vmax.f32 %v1223, 0.0
        %v2090 = vmax.f32 %v1226, 0.0
        %v2091 = vmax.f32 %v1231, 0.0
        %v2092 = vmax.f32 %v1234, 0.0
        %v2093 = vmax.f32 %v1239, 0.0
        %v2094 = vmax.f32 %v1242, 0.0
        %v2095 = vmax.f32 %v1247, 0.0
        %v2096 = vmax.f32 %v1250, 0.0
        %v2097 = vmax.f32 %v1255, 0.0
        %v2098 = vmax.f32 %v1258, 0.0
        %v2099 = vmax.f32 %v1263, 0.0
        %v2100 = vmax.f32 %v1266, 0.0
        %v2101 = vmax.f32 %v1271, 0.0
        %v2102 = vmax.f32 %v1274, 0.0
        %v2103 = vmax.f32 %v1279, 0.0
        %v2104 = vmax.f32 %v1282, 0.0
        %v2105 = vmax.f32 %v1287, 0.0
        %v2106 = vmax.f32 %v1290, 0.0
        %v2107 = vmax.f32 %v1295, 0.0
        %v2108 = vmax.f32 %v1298, 0.0
        %v2109 = vmax.f32 %v1303, 0.0
        %v2110 = vmax.f32 %v1306, 0.0
        %v2111 = vmax.f32 %v1311, 0.0
        %v2112 = vmax.f32 %v1314, 0.0
        %v2113 = vmax.f32 %v1319, 0.0
        %v2114 = vmax.f32 %v1322, 0.0
        %v2115 = vmax.f32 %v1327, 0.0
        %v2116 = vmax.f32 %v1330, 0.0
        %v2117 = vmax.f32 %v1335, 0.0
        %v2118 = vmax.f32 %v1338, 0.0
        %v2119 = vmax.f32 %v1343, 0.0
        %v2120 = vmax.f32 %v1346, 0.0
        %v2121 = vmax.f32 %v1351, 0.0
        %v2122 = vmax.f32 %v1354, 0.0
        %v2123 = vmax.f32 %v1359, 0.0
        %v2124 = vmax.f32 %v1362, 0.0
        %v2125 = vmax.f32 %v1367, 0.0
        %v2126 = vmax.f32 %v1370, 0.0
        %v2127 = vmax.f32 %v1375, 0.0
        %v2128 = vmax.f32 %v1378, 0.0
        %v2129 = vmax.f32 %v1383, 0.0
        %v2130 = vmax.f32 %v1386, 0.0
        %v2131 = vmax.f32 %v1391, 0.0
        %v2132 = vmax.f32 %v1394, 0.0
        %v2133 = vmax.f32 %v1399, 0.0
        %v2134 = vmax.f32 %v1402, 0.0
        %v2135 = vmax.f32 %v1407, 0.0
        %v2136 = vmax.f32 %v1410, 0.0
        %v2137 = vmax.f32 %v1415, 0.0
        %v2138 = vmax.f32 %v1418, 0.0
        %v2139 = vmax.f32 %v1423, 0.0
        %v2140 = vmax.f32 %v1426, 0.0
        %v2141 = vmax.f32 %v1431, 0.0
        %v2142 = vmax.f32 %v1434, 0.0
        %v2143 = vmax.f32 %v1439, 0.0
        %v2144 = vmax.f32 %v1442, 0.0
        %v2145 = vmax.f32 %v1447, 0.0
        %v2146 = vmax.f32 %v1450, 0.0
        %v2147 = vmax.f32 %v1455, 0.0
        %v2148 = vmax.f32 %v1458, 0.0
        %v2149 = vmax.f32 %v1463, 0.0
        %v2150 = vmax.f32 %v1466, 0.0
        %v2151 = vmax.f32 %v1471, 0.0
        %v2152 = vmax.f32 %v1474, 0.0
        %v2153 = vmax.f32 %v1479, 0.0
        %v2154 = vmax.f32 %v1482, 0.0
        %v2155 = vmax.f32 %v1487, 0.0
        %v2156 = vmax.f32 %v1490, 0.0
        %v2157 = vmax.f32 %v1495, 0.0
        %v2158 = vmax.f32 %v1498, 0.0
        %v2159 = vmax.f32 %v1503, 0.0
        %v2160 = vmax.f32 %v1506, 0.0
        %v2161 = vmax.f32 %v1511, 0.0
        %v2162 = vmax.f32 %v1514, 0.0
        %v2163 = vmax.f32 %v1519, 0.0
        %v2164 = vmax.f32 %v1522, 0.0
        %v2165 = vmax.f32 %v1527, 0.0
        %v2166 = vmax.f32 %v1530, 0.0
        %v2167 = vmax.f32 %v1535, 0.0
        %v2168 = vmax.f32 %v1538, 0.0
        %v2169 = vmax.f32 %v1543, 0.0
        %v2170 = vmax.f32 %v1546, 0.0
        %v2171 = vmax.f32 %v1551, 0.0
        %v2172 = vmax.f32 %v1554, 0.0
        %v2173 = vmax.f32 %v1559, 0.0
        %v2174 = vmax.f32 %v1562, 0.0
        %v2175 = vmax.f32 %v1567, 0.0
        %v2176 = vmax.f32 %v1570, 0.0
        %v2177 = vmax.f32 %v1575, 0.0
        %v2178 = vmax.f32 %v1578, 0.0
        %v2179 = vmax.f32 %v1583, 0.0
        %v2180 = vmax.f32 %v1586, 0.0
        %v2181 = vmax.f32 %v1591, 0.0
        %v2182 = vmax.f32 %v1594, 0.0
        %v2183 = vmax.f32 %v1599, 0.0
        %v2184 = vmax.f32 %v1602, 0.0
        %v2185 = vmax.f32 %v1607, 0.0
        %v2186 = vmax.f32 %v1610, 0.0
        %v2187 = vmax.f32 %v1615, 0.0
        %v2188 = vmax.f32 %v1618, 0.0
        %v2189 = vmax.f32 %v1623, 0.0
        %v2190 = vmax.f32 %v1626, 0.0
        %v2191 = vmax.f32 %v1631, 0.0
        %v2192 = vmax.f32 %v1634, 0.0
        %v2193 = vmax.f32 %v1639, 0.0
        %v2194 = vmax.f32 %v1642, 0.0
        %v2195 = vmax.f32 %v1647, 0.0
        %v2196 = vmax.f32 %v1650, 0.0
        %v2197 = vmax.f32 %v1655, 0.0
        %v2198 = vmax.f32 %v1658, 0.0
        %v2199 = vmax.f32 %v1663, 0.0
        %v2200 = vmax.f32 %v1666, 0.0
        %v2201 = vmax.f32 %v1671, 0.0
        %v2202 = vmax.f32 %v1674, 0.0
        %v2203 = vmax.f32 %v1679, 0.0
        %v2204 = vmax.f32 %v1682, 0.0
        %v2205 = vmax.f32 %v1687, 0.0
        %v2206 = vmax.f32 %v1690, 0.0
        %v2207 = vmax.f32 %v1695, 0.0
        %v2208 = vmax.f32 %v1698, 0.0
        %v2209 = vmax.f32 %v1703, 0.0
        %v2210 = vmax.f32 %v1706, 0.0
        %v2211 = vmax.f32 %v1711, 0.0
        %v2212 = vmax.f32 %v1714, 0.0
        %v2213 = vmax.f32 %v1719, 0.0
        %v2214 = vmax.f32 %v1722, 0.0
        %v2215 = vmax.f32 %v1727, 0.0
        %v2216 = vmax.f32 %v1730, 0.0
        %v2217 = vmax.f32 %v1735, 0.0
        %v2218 = vmax.f32 %v1738, 0.0
        %v2219 = vmax.f32 %v1743, 0.0
        %v2220 = vmax.f32 %v1746, 0.0
        %v2221 = vmax.f32 %v1751, 0.0
        %v2222 = vmax.f32 %v1754, 0.0
        %v2223 = vmax.f32 %v1759, 0.0
        %v2224 = vmax.f32 %v1762, 0.0
        %v2225 = vmax.f32 %v1767, 0.0
        %v2226 = vmax.f32 %v1770, 0.0
        %v2227 = vmax.f32 %v1775, 0.0
        %v2228 = vmax.f32 %v1778, 0.0
        %v2229 = vmax.f32 %v1783, 0.0
        %v2230 = vmax.f32 %v1786, 0.0
        %v2231 = vmax.f32 %v1791, 0.0
        %v2232 = vmax.f32 %v1794, 0.0
        %v2233 = vmax.f32 %v1799, 0.0
        %v2234 = vmax.f32 %v1802, 0.0
        %v2235 = vmax.f32 %v1807, 0.0
        %v2236 = vmax.f32 %v1810, 0.0
        %v2237 = vmax.f32 %v1815, 0.0
        %v2238 = vmax.f32 %v1818, 0.0
        %v2239 = vmax.f32 %v1823, 0.0
        %v2240 = vmax.f32 %v1826, 0.0
        %v2241 = vmax.f32 %v1831, 0.0
        %v2242 = vmax.f32 %v1834, 0.0
        %v2243 = vmax.f32 %v1839, 0.0
        %v2244 = vmax.f32 %v1842, 0.0
        %v2245 = vmax.f32 %v1847, 0.0
        %v2246 = vmax.f32 %v1850, 0.0
        %v2247 = vmax.f32 %v1855, 0.0
        %v2248 = vmax.f32 %v1858, 0.0
        %v2249 = vmax.f32 %v1863, 0.0
        %v2250 = vmax.f32 %v1866, 0.0
        %v2251 = vmax.f32 %v1871, 0.0
        %v2252 = vmax.f32 %v1874, 0.0
        %v2253 = vmax.f32 %v1879, 0.0
        %v2254 = vmax.f32 %v1882, 0.0
        %v2255 = vmax.f32 %v1887, 0.0
        %v2256 = vmax.f32 %v1890, 0.0
        %v2257 = vmax.f32 %v1895, 0.0
        %v2258 = vmax.f32 %v1898, 0.0
        %v2259 = vmax.f32 %v1903, 0.0
        %v2260 = vmax.f32 %v1906, 0.0
        %v2261 = vmax.f32 %v1911, 0.0
        %v2262 = vmax.f32 %v1914, 0.0
        %v2263 = vmax.f32 %v1919, 0.0
        %v2264 = vmax.f32 %v1922, 0.0
        %v2265 = vmax.f32 %v1927, 0.0
        %v2266 = vmax.f32 %v1930, 0.0
        %v2267 = vmax.f32 %v1935, 0.0
        %v2268 = vmax.f32 %v1938, 0.0
        %v2269 = vmax.f32 %v1943, 0.0
        %v2270 = vmax.f32 %v1946, 0.0
        %v2271 = vmax.f32 %v1951, 0.0
        %v2272 = vmax.f32 %v1954, 0.0
        %v2273 = vmax.f32 %v1959, 0.0
        %v2274 = vmax.f32 %v1962, 0.0
        %v2275 = vmax.f32 %v1967, 0.0
        %v2276 = vmax.f32 %v1970, 0.0
        %v2277 = vmax.f32 %v1975, 0.0
        %v2278 = vmax.f32 %v1978, 0.0
        %v2279 = vmax.f32 %v1983, 0.0
        %v2280 = vmax.f32 %v1986, 0.0
        %v2281 = vmax.f32 %v1991, 0.0
        %v2282 = vmax.f32 %v1994, 0.0
        %v2283 = vmax.f32 %v1999, 0.0
        %v2284 = vmax.f32 %v2002, 0.0
        %v2285 = vmax.f32 %v2007, 0.0
        %v2286 = vmax.f32 %v2010, 0.0
        %v2287 = vmax.f32 %v2015, 0.0
        %v2288 = vmax.f32 %v2018, 0.0
        %v2289 = vmax.f32 %v2023, 0.0
        %v2290 = vmax.f32 %v2026, 0.0
        %v2291 = vmax.f32 %v2031, 0.0
        %v2292 = vmax.f32 %v2034, 0.0
        %v2293 = vld [vmem:[%s3] sm:$0xff]
        %v2294 = vld [vmem:[%s3 + $0x8] sm:$0xff]
        %v2295 = vld [vmem:[%s3 + $0x10] sm:$0xff]
        %v2296 = vld [vmem:[%s3 + $0x18] sm:$0xff]
        %v2297 = vld [vmem:[%s3 + $0x20] sm:$0xff]
        %v2298 = vld [vmem:[%s3 + $0x28] sm:$0xff]
        %v2299 = vld [vmem:[%s3 + $0x30] sm:$0xff]
        %v2300 = vld [vmem:[%s3 + $0x38] sm:$0xff]
        %v2301 = vld [vmem:[%s3 + $0x40] sm:$0xff]
        %v2302 = vld [vmem:[%s3 + $0x48] sm:$0xff]
        %v2303 = vld [vmem:[%s3 + $0x50] sm:$0xff]
        %v2304 = vld [vmem:[%s3 + $0x58] sm:$0xff]
        %v2305 = vld [vmem:[%s3 + $0x60] sm:$0xff]
        %v2306 = vld [vmem:[%s3 + $0x68] sm:$0xff]
        %v2307 = vld [vmem:[%s3 + $0x70] sm:$0xff]
        %v2308 = vld [vmem:[%s3 + $0x78] sm:$0xff]
        %2309 = vmatprep.subr.mxu0 0.0
        %2310 = vmatpush1.msra.mxu0 %v2037
        %2311 = vmatprep.subr.mxu0 0.0
        %2312 = vmatpush1.msra.mxu0 %v2038
        %2313 = vmatprep.subr.mxu0 0.0
        %2314 = vmatpush1.msra.mxu0 %v2039
        %2315 = vmatprep.subr.mxu0 0.0
        %2316 = vmatpush1.msra.mxu0 %v2040
        %2317 = vmatprep.subr.mxu0 0.0
        %2318 = vmatpush1.msra.mxu0 %v2041
        %2319 = vmatprep.subr.mxu0 0.0
        %2320 = vmatpush1.msra.mxu0 %v2042
        %2321 = vmatprep.subr.mxu0 0.0
        %2322 = vmatpush1.msra.mxu0 %v2043
        %2323 = vmatprep.subr.mxu0 0.0
        %2324 = vmatpush1.msra.mxu0 %v2044
        %2325 = vmatprep.subr.mxu0 0.0
        %2326 = vmatpush1.msra.mxu0 %v2045
        %2327 = vmatprep.subr.mxu0 0.0
        %2328 = vmatpush1.msra.mxu0 %v2046
        %2329 = vmatprep.subr.mxu0 0.0
        %2330 = vmatpush1.msra.mxu0 %v2047
        %2331 = vmatprep.subr.mxu0 0.0
        %2332 = vmatpush1.msra.mxu0 %v2048
        %2333 = vmatprep.subr.mxu0 0.0
        %2334 = vmatpush1.msra.mxu0 %v2049
        %2335 = vmatprep.subr.mxu0 0.0
        %2336 = vmatpush1.msra.mxu0 %v2050
        %2337 = vmatprep.subr.mxu0 0.0
        %2338 = vmatpush1.msra.mxu0 %v2051
        %2339 = vmatprep.subr.mxu0 0.0
        %2340 = vmatpush1.msra.mxu0 %v2052
        %2341 = vmatprep.subr.mxu0 0.0
        %2342 = vmatpush1.msra.mxu0 %v2053
        %2343 = vmatprep.subr.mxu0 0.0
        %2344 = vmatpush1.msra.mxu0 %v2054
        %2345 = vmatprep.subr.mxu0 0.0
        %2346 = vmatpush1.msra.mxu0 %v2055
        %2347 = vmatprep.subr.mxu0 0.0
        %2348 = vmatpush1.msra.mxu0 %v2056
        %2349 = vmatprep.subr.mxu0 0.0
        %2350 = vmatpush1.msra.mxu0 %v2057
        %2351 = vmatprep.subr.mxu0 0.0
        %2352 = vmatpush1.msra.mxu0 %v2058
        %2353 = vmatprep.subr.mxu0 0.0
        %2354 = vmatpush1.msra.mxu0 %v2059
        %2355 = vmatprep.subr.mxu0 0.0
        %2356 = vmatpush1.msra.mxu0 %v2060
        %2357 = vmatprep.subr.mxu0 0.0
        %2358 = vmatpush1.msra.mxu0 %v2061
        %2359 = vmatprep.subr.mxu0 0.0
        %2360 = vmatpush1.msra.mxu0 %v2062
        %2361 = vmatprep.subr.mxu0 0.0
        %2362 = vmatpush1.msra.mxu0 %v2063
        %2363 = vmatprep.subr.mxu0 0.0
        %2364 = vmatpush1.msra.mxu0 %v2064
        %2365 = vmatprep.subr.mxu0 0.0
        %2366 = vmatpush1.msra.mxu0 %v2065
        %2367 = vmatprep.subr.mxu0 0.0
        %2368 = vmatpush1.msra.mxu0 %v2066
        %2369 = vmatprep.subr.mxu0 0.0
        %2370 = vmatpush1.msra.mxu0 %v2067
        %2371 = vmatprep.subr.mxu0 0.0
        %2372 = vmatpush1.msra.mxu0 %v2068
        %2373 = vmatprep.mubr.f32.mxu0 %v2294
        %2374 = vmatmul.mubr.f32.gmra.mrb[0].mxu0 %v2293
        %v2375 = vpop.f32.mrb[0].mxu0
        %v2376 = vadd.f32 0.0, %v2375
        %v2377 = vpop.f32.mrb[0].mxu0
        %2378 = vdwg.mxu0
        %2379 = vmatprep.subr.mxu0 0.0
        %2380 = vmatpush1.msra.mxu0 %v2069
        %2381 = vmatprep.subr.mxu0 0.0
        %2382 = vmatpush1.msra.mxu0 %v2070
        %2383 = vmatprep.subr.mxu0 0.0
        %2384 = vmatpush1.msra.mxu0 %v2071
        %2385 = vmatprep.subr.mxu0 0.0
        %2386 = vmatpush1.msra.mxu0 %v2072
        %2387 = vmatprep.subr.mxu0 0.0
        %2388 = vmatpush1.msra.mxu0 %v2073
        %2389 = vmatprep.subr.mxu0 0.0
        %2390 = vmatpush1.msra.mxu0 %v2074
        %2391 = vmatprep.subr.mxu0 0.0
        %2392 = vmatpush1.msra.mxu0 %v2075
        %2393 = vmatprep.subr.mxu0 0.0
        %2394 = vmatpush1.msra.mxu0 %v2076
        %2395 = vmatprep.subr.mxu0 0.0
        %2396 = vmatpush1.msra.mxu0 %v2077
        %2397 = vmatprep.subr.mxu0 0.0
        %2398 = vmatpush1.msra.mxu0 %v2078
        %2399 = vmatprep.subr.mxu0 0.0
        %2400 = vmatpush1.msra.mxu0 %v2079
        %2401 = vmatprep.subr.mxu0 0.0
        %2402 = vmatpush1.msra.mxu0 %v2080
        %2403 = vmatprep.subr.mxu0 0.0
        %2404 = vmatpush1.msra.mxu0 %v2081
        %2405 = vmatprep.subr.mxu0 0.0
        %2406 = vmatpush1.msra.mxu0 %v2082
        %2407 = vmatprep.subr.mxu0 0.0
        %2408 = vmatpush1.msra.mxu0 %v2083
        %2409 = vmatprep.subr.mxu0 0.0
        %2410 = vmatpush1.msra.mxu0 %v2084
        %2411 = vmatprep.subr.mxu0 0.0
        %2412 = vmatpush1.msra.mxu0 %v2085
        %2413 = vmatprep.subr.mxu0 0.0
        %2414 = vmatpush1.msra.mxu0 %v2086
        %2415 = vmatprep.subr.mxu0 0.0
        %2416 = vmatpush1.msra.mxu0 %v2087
        %2417 = vmatprep.subr.mxu0 0.0
        %2418 = vmatpush1.msra.mxu0 %v2088
        %2419 = vmatprep.subr.mxu0 0.0
        %2420 = vmatpush1.msra.mxu0 %v2089
        %2421 = vmatprep.subr.mxu0 0.0
        %2422 = vmatpush1.msra.mxu0 %v2090
        %2423 = vmatprep.subr.mxu0 0.0
        %2424 = vmatpush1.msra.mxu0 %v2091
        %2425 = vmatprep.subr.mxu0 0.0
        %2426 = vmatpush1.msra.mxu0 %v2092
        %2427 = vmatprep.subr.mxu0 0.0
        %2428 = vmatpush1.msra.mxu0 %v2093
        %2429 = vmatprep.subr.mxu0 0.0
        %2430 = vmatpush1.msra.mxu0 %v2094
        %2431 = vmatprep.subr.mxu0 0.0
        %2432 = vmatpush1.msra.mxu0 %v2095
        %2433 = vmatprep.subr.mxu0 0.0
        %2434 = vmatpush1.msra.mxu0 %v2096
        %2435 = vmatprep.subr.mxu0 0.0
        %2436 = vmatpush1.msra.mxu0 %v2097
        %2437 = vmatprep.subr.mxu0 0.0
        %2438 = vmatpush1.msra.mxu0 %v2098
        %2439 = vmatprep.subr.mxu0 0.0
        %2440 = vmatpush1.msra.mxu0 %v2099
        %2441 = vmatprep.subr.mxu0 0.0
        %2442 = vmatpush1.msra.mxu0 %v2100
        %2443 = vmatprep.mubr.f32.mxu0 %v2296
        %2444 = vmatmul.mubr.f32.gmra.mrb[0].mxu0 %v2295
        %v2445 = vpop.f32.mrb[0].mxu0
        %v2446 = vadd.f32 %v2376, %v2445
        %v2447 = vpop.f32.mrb[0].mxu0
        %2448 = vdwg.mxu0
        %2449 = vmatprep.subr.mxu0 0.0
        %2450 = vmatpush1.msra.mxu0 %v2101
        %2451 = vmatprep.subr.mxu0 0.0
        %2452 = vmatpush1.msra.mxu0 %v2102
        %2453 = vmatprep.subr.mxu0 0.0
        %2454 = vmatpush1.msra.mxu0 %v2103
        %2455 = vmatprep.subr.mxu0 0.0
        %2456 = vmatpush1.msra.mxu0 %v2104
        %2457 = vmatprep.subr.mxu0 0.0
        %2458 = vmatpush1.msra.mxu0 %v2105
        %2459 = vmatprep.subr.mxu0 0.0
        %2460 = vmatpush1.msra.mxu0 %v2106
        %2461 = vmatprep.subr.mxu0 0.0
        %2462 = vmatpush1.msra.mxu0 %v2107
        %2463 = vmatprep.subr.mxu0 0.0
        %2464 = vmatpush1.msra.mxu0 %v2108
        %2465 = vmatprep.subr.mxu0 0.0
        %2466 = vmatpush1.msra.mxu0 %v2109
        %2467 = vmatprep.subr.mxu0 0.0
        %2468 = vmatpush1.msra.mxu0 %v2110
        %2469 = vmatprep.subr.mxu0 0.0
        %2470 = vmatpush1.msra.mxu0 %v2111
        %2471 = vmatprep.subr.mxu0 0.0
        %2472 = vmatpush1.msra.mxu0 %v2112
        %2473 = vmatprep.subr.mxu0 0.0
        %2474 = vmatpush1.msra.mxu0 %v2113
        %2475 = vmatprep.subr.mxu0 0.0
        %2476 = vmatpush1.msra.mxu0 %v2114
        %2477 = vmatprep.subr.mxu0 0.0
        %2478 = vmatpush1.msra.mxu0 %v2115
        %2479 = vmatprep.subr.mxu0 0.0
        %2480 = vmatpush1.msra.mxu0 %v2116
        %2481 = vmatprep.subr.mxu0 0.0
        %2482 = vmatpush1.msra.mxu0 %v2117
        %2483 = vmatprep.subr.mxu0 0.0
        %2484 = vmatpush1.msra.mxu0 %v2118
        %2485 = vmatprep.subr.mxu0 0.0
        %2486 = vmatpush1.msra.mxu0 %v2119
        %2487 = vmatprep.subr.mxu0 0.0
        %2488 = vmatpush1.msra.mxu0 %v2120
        %2489 = vmatprep.subr.mxu0 0.0
        %2490 = vmatpush1.msra.mxu0 %v2121
        %2491 = vmatprep.subr.mxu0 0.0
        %2492 = vmatpush1.msra.mxu0 %v2122
        %2493 = vmatprep.subr.mxu0 0.0
        %2494 = vmatpush1.msra.mxu0 %v2123
        %2495 = vmatprep.subr.mxu0 0.0
        %2496 = vmatpush1.msra.mxu0 %v2124
        %2497 = vmatprep.subr.mxu0 0.0
        %2498 = vmatpush1.msra.mxu0 %v2125
        %2499 = vmatprep.subr.mxu0 0.0
        %2500 = vmatpush1.msra.mxu0 %v2126
        %2501 = vmatprep.subr.mxu0 0.0
        %2502 = vmatpush1.msra.mxu0 %v2127
        %2503 = vmatprep.subr.mxu0 0.0
        %2504 = vmatpush1.msra.mxu0 %v2128
        %2505 = vmatprep.subr.mxu0 0.0
        %2506 = vmatpush1.msra.mxu0 %v2129
        %2507 = vmatprep.subr.mxu0 0.0
        %2508 = vmatpush1.msra.mxu0 %v2130
        %2509 = vmatprep.subr.mxu0 0.0
        %2510 = vmatpush1.msra.mxu0 %v2131
        %2511 = vmatprep.subr.mxu0 0.0
        %2512 = vmatpush1.msra.mxu0 %v2132
        %2513 = vmatprep.mubr.f32.mxu0 %v2298
        %2514 = vmatmul.mubr.f32.gmra.mrb[0].mxu0 %v2297
        %v2515 = vpop.f32.mrb[0].mxu0
        %v2516 = vadd.f32 %v2446, %v2515
        %v2517 = vpop.f32.mrb[0].mxu0
        %2518 = vdwg.mxu0
        %2519 = vmatprep.subr.mxu0 0.0
        %2520 = vmatpush1.msra.mxu0 %v2133
        %2521 = vmatprep.subr.mxu0 0.0
        %2522 = vmatpush1.msra.mxu0 %v2134
        %2523 = vmatprep.subr.mxu0 0.0
        %2524 = vmatpush1.msra.mxu0 %v2135
        %2525 = vmatprep.subr.mxu0 0.0
        %2526 = vmatpush1.msra.mxu0 %v2136
        %2527 = vmatprep.subr.mxu0 0.0
        %2528 = vmatpush1.msra.mxu0 %v2137
        %2529 = vmatprep.subr.mxu0 0.0
        %2530 = vmatpush1.msra.mxu0 %v2138
        %2531 = vmatprep.subr.mxu0 0.0
        %2532 = vmatpush1.msra.mxu0 %v2139
        %2533 = vmatprep.subr.mxu0 0.0
        %2534 = vmatpush1.msra.mxu0 %v2140
        %2535 = vmatprep.subr.mxu0 0.0
        %2536 = vmatpush1.msra.mxu0 %v2141
        %2537 = vmatprep.subr.mxu0 0.0
        %2538 = vmatpush1.msra.mxu0 %v2142
        %2539 = vmatprep.subr.mxu0 0.0
        %2540 = vmatpush1.msra.mxu0 %v2143
        %2541 = vmatprep.subr.mxu0 0.0
        %2542 = vmatpush1.msra.mxu0 %v2144
        %2543 = vmatprep.subr.mxu0 0.0
        %2544 = vmatpush1.msra.mxu0 %v2145
        %2545 = vmatprep.subr.mxu0 0.0
        %2546 = vmatpush1.msra.mxu0 %v2146
        %2547 = vmatprep.subr.mxu0 0.0
        %2548 = vmatpush1.msra.mxu0 %v2147
        %2549 = vmatprep.subr.mxu0 0.0
        %2550 = vmatpush1.msra.mxu0 %v2148
        %2551 = vmatprep.subr.mxu0 0.0
        %2552 = vmatpush1.msra.mxu0 %v2149
        %2553 = vmatprep.subr.mxu0 0.0
        %2554 = vmatpush1.msra.mxu0 %v2150
        %2555 = vmatprep.subr.mxu0 0.0
        %2556 = vmatpush1.msra.mxu0 %v2151
        %2557 = vmatprep.subr.mxu0 0.0
        %2558 = vmatpush1.msra.mxu0 %v2152
        %2559 = vmatprep.subr.mxu0 0.0
        %2560 = vmatpush1.msra.mxu0 %v2153
        %2561 = vmatprep.subr.mxu0 0.0
        %2562 = vmatpush1.msra.mxu0 %v2154
        %2563 = vmatprep.subr.mxu0 0.0
        %2564 = vmatpush1.msra.mxu0 %v2155
        %2565 = vmatprep.subr.mxu0 0.0
        %2566 = vmatpush1.msra.mxu0 %v2156
        %2567 = vmatprep.subr.mxu0 0.0
        %2568 = vmatpush1.msra.mxu0 %v2157
        %2569 = vmatprep.subr.mxu0 0.0
        %2570 = vmatpush1.msra.mxu0 %v2158
        %2571 = vmatprep.subr.mxu0 0.0
        %2572 = vmatpush1.msra.mxu0 %v2159
        %2573 = vmatprep.subr.mxu0 0.0
        %2574 = vmatpush1.msra.mxu0 %v2160
        %2575 = vmatprep.subr.mxu0 0.0
        %2576 = vmatpush1.msra.mxu0 %v2161
        %2577 = vmatprep.subr.mxu0 0.0
        %2578 = vmatpush1.msra.mxu0 %v2162
        %2579 = vmatprep.subr.mxu0 0.0
        %2580 = vmatpush1.msra.mxu0 %v2163
        %2581 = vmatprep.subr.mxu0 0.0
        %2582 = vmatpush1.msra.mxu0 %v2164
        %2583 = vmatprep.mubr.f32.mxu0 %v2300
        %2584 = vmatmul.mubr.f32.gmra.mrb[0].mxu0 %v2299
        %v2585 = vpop.f32.mrb[0].mxu0
        %v2586 = vadd.f32 %v2516, %v2585
        %v2587 = vpop.f32.mrb[0].mxu0
        %2588 = vdwg.mxu0
        %2589 = vmatprep.subr.mxu0 0.0
        %2590 = vmatpush1.msra.mxu0 %v2165
        %2591 = vmatprep.subr.mxu0 0.0
        %2592 = vmatpush1.msra.mxu0 %v2166
        %2593 = vmatprep.subr.mxu0 0.0
        %2594 = vmatpush1.msra.mxu0 %v2167
        %2595 = vmatprep.subr.mxu0 0.0
        %2596 = vmatpush1.msra.mxu0 %v2168
        %2597 = vmatprep.subr.mxu0 0.0
        %2598 = vmatpush1.msra.mxu0 %v2169
        %2599 = vmatprep.subr.mxu0 0.0
        %2600 = vmatpush1.msra.mxu0 %v2170
        %2601 = vmatprep.subr.mxu0 0.0
        %2602 = vmatpush1.msra.mxu0 %v2171
        %2603 = vmatprep.subr.mxu0 0.0
        %2604 = vmatpush1.msra.mxu0 %v2172
        %2605 = vmatprep.subr.mxu0 0.0
        %2606 = vmatpush1.msra.mxu0 %v2173
        %2607 = vmatprep.subr.mxu0 0.0
        %2608 = vmatpush1.msra.mxu0 %v2174
        %2609 = vmatprep.subr.mxu0 0.0
        %2610 = vmatpush1.msra.mxu0 %v2175
        %2611 = vmatprep.subr.mxu0 0.0
        %2612 = vmatpush1.msra.mxu0 %v2176
        %2613 = vmatprep.subr.mxu0 0.0
        %2614 = vmatpush1.msra.mxu0 %v2177
        %2615 = vmatprep.subr.mxu0 0.0
        %2616 = vmatpush1.msra.mxu0 %v2178
        %2617 = vmatprep.subr.mxu0 0.0
        %2618 = vmatpush1.msra.mxu0 %v2179
        %2619 = vmatprep.subr.mxu0 0.0
        %2620 = vmatpush1.msra.mxu0 %v2180
        %2621 = vmatprep.subr.mxu0 0.0
        %2622 = vmatpush1.msra.mxu0 %v2181
        %2623 = vmatprep.subr.mxu0 0.0
        %2624 = vmatpush1.msra.mxu0 %v2182
        %2625 = vmatprep.subr.mxu0 0.0
        %2626 = vmatpush1.msra.mxu0 %v2183
        %2627 = vmatprep.subr.mxu0 0.0
        %2628 = vmatpush1.msra.mxu0 %v2184
        %2629 = vmatprep.subr.mxu0 0.0
        %2630 = vmatpush1.msra.mxu0 %v2185
        %2631 = vmatprep.subr.mxu0 0.0
        %2632 = vmatpush1.msra.mxu0 %v2186
        %2633 = vmatprep.subr.mxu0 0.0
        %2634 = vmatpush1.msra.mxu0 %v2187
        %2635 = vmatprep.subr.mxu0 0.0
        %2636 = vmatpush1.msra.mxu0 %v2188
        %2637 = vmatprep.subr.mxu0 0.0
        %2638 = vmatpush1.msra.mxu0 %v2189
        %2639 = vmatprep.subr.mxu0 0.0
        %2640 = vmatpush1.msra.mxu0 %v2190
        %2641 = vmatprep.subr.mxu0 0.0
        %2642 = vmatpush1.msra.mxu0 %v2191
        %2643 = vmatprep.subr.mxu0 0.0
        %2644 = vmatpush1.msra.mxu0 %v2192
        %2645 = vmatprep.subr.mxu0 0.0
        %2646 = vmatpush1.msra.mxu0 %v2193
        %2647 = vmatprep.subr.mxu0 0.0
        %2648 = vmatpush1.msra.mxu0 %v2194
        %2649 = vmatprep.subr.mxu0 0.0
        %2650 = vmatpush1.msra.mxu0 %v2195
        %2651 = vmatprep.subr.mxu0 0.0
        %2652 = vmatpush1.msra.mxu0 %v2196
        %2653 = vmatprep.mubr.f32.mxu0 %v2302
        %2654 = vmatmul.mubr.f32.gmra.mrb[0].mxu0 %v2301
        %v2655 = vpop.f32.mrb[0].mxu0
        %v2656 = vadd.f32 %v2586, %v2655
        %v2657 = vpop.f32.mrb[0].mxu0
        %2658 = vdwg.mxu0
        %2659 = vmatprep.subr.mxu0 0.0
        %2660 = vmatpush1.msra.mxu0 %v2197
        %2661 = vmatprep.subr.mxu0 0.0
        %2662 = vmatpush1.msra.mxu0 %v2198
        %2663 = vmatprep.subr.mxu0 0.0
        %2664 = vmatpush1.msra.mxu0 %v2199
        %2665 = vmatprep.subr.mxu0 0.0
        %2666 = vmatpush1.msra.mxu0 %v2200
        %2667 = vmatprep.subr.mxu0 0.0
        %2668 = vmatpush1.msra.mxu0 %v2201
        %2669 = vmatprep.subr.mxu0 0.0
        %2670 = vmatpush1.msra.mxu0 %v2202
        %2671 = vmatprep.subr.mxu0 0.0
        %2672 = vmatpush1.msra.mxu0 %v2203
        %2673 = vmatprep.subr.mxu0 0.0
        %2674 = vmatpush1.msra.mxu0 %v2204
        %2675 = vmatprep.subr.mxu0 0.0
        %2676 = vmatpush1.msra.mxu0 %v2205
        %2677 = vmatprep.subr.mxu0 0.0
        %2678 = vmatpush1.msra.mxu0 %v2206
        %2679 = vmatprep.subr.mxu0 0.0
        %2680 = vmatpush1.msra.mxu0 %v2207
        %2681 = vmatprep.subr.mxu0 0.0
        %2682 = vmatpush1.msra.mxu0 %v2208
        %2683 = vmatprep.subr.mxu0 0.0
        %2684 = vmatpush1.msra.mxu0 %v2209
        %2685 = vmatprep.subr.mxu0 0.0
        %2686 = vmatpush1.msra.mxu0 %v2210
        %2687 = vmatprep.subr.mxu0 0.0
        %2688 = vmatpush1.msra.mxu0 %v2211
        %2689 = vmatprep.subr.mxu0 0.0
        %2690 = vmatpush1.msra.mxu0 %v2212
        %2691 = vmatprep.subr.mxu0 0.0
        %2692 = vmatpush1.msra.mxu0 %v2213
        %2693 = vmatprep.subr.mxu0 0.0
        %2694 = vmatpush1.msra.mxu0 %v2214
        %2695 = vmatprep.subr.mxu0 0.0
        %2696 = vmatpush1.msra.mxu0 %v2215
        %2697 = vmatprep.subr.mxu0 0.0
        %2698 = vmatpush1.msra.mxu0 %v2216
        %2699 = vmatprep.subr.mxu0 0.0
        %2700 = vmatpush1.msra.mxu0 %v2217
        %2701 = vmatprep.subr.mxu0 0.0
        %2702 = vmatpush1.msra.mxu0 %v2218
        %2703 = vmatprep.subr.mxu0 0.0
        %2704 = vmatpush1.msra.mxu0 %v2219
        %2705 = vmatprep.subr.mxu0 0.0
        %2706 = vmatpush1.msra.mxu0 %v2220
        %2707 = vmatprep.subr.mxu0 0.0
        %2708 = vmatpush1.msra.mxu0 %v2221
        %2709 = vmatprep.subr.mxu0 0.0
        %2710 = vmatpush1.msra.mxu0 %v2222
        %2711 = vmatprep.subr.mxu0 0.0
        %2712 = vmatpush1.msra.mxu0 %v2223
        %2713 = vmatprep.subr.mxu0 0.0
        %2714 = vmatpush1.msra.mxu0 %v2224
        %2715 = vmatprep.subr.mxu0 0.0
        %2716 = vmatpush1.msra.mxu0 %v2225
        %2717 = vmatprep.subr.mxu0 0.0
        %2718 = vmatpush1.msra.mxu0 %v2226
        %2719 = vmatprep.subr.mxu0 0.0
        %2720 = vmatpush1.msra.mxu0 %v2227
        %2721 = vmatprep.subr.mxu0 0.0
        %2722 = vmatpush1.msra.mxu0 %v2228
        %2723 = vmatprep.mubr.f32.mxu0 %v2304
        %2724 = vmatmul.mubr.f32.gmra.mrb[0].mxu0 %v2303
        %v2725 = vpop.f32.mrb[0].mxu0
        %v2726 = vadd.f32 %v2656, %v2725
        %v2727 = vpop.f32.mrb[0].mxu0
        %2728 = vdwg.mxu0
        %2729 = vmatprep.subr.mxu0 0.0
        %2730 = vmatpush1.msra.mxu0 %v2229
        %2731 = vmatprep.subr.mxu0 0.0
        %2732 = vmatpush1.msra.mxu0 %v2230
        %2733 = vmatprep.subr.mxu0 0.0
        %2734 = vmatpush1.msra.mxu0 %v2231
        %2735 = vmatprep.subr.mxu0 0.0
        %2736 = vmatpush1.msra.mxu0 %v2232
        %2737 = vmatprep.subr.mxu0 0.0
        %2738 = vmatpush1.msra.mxu0 %v2233
        %2739 = vmatprep.subr.mxu0 0.0
        %2740 = vmatpush1.msra.mxu0 %v2234
        %2741 = vmatprep.subr.mxu0 0.0
        %2742 = vmatpush1.msra.mxu0 %v2235
        %2743 = vmatprep.subr.mxu0 0.0
        %2744 = vmatpush1.msra.mxu0 %v2236
        %2745 = vmatprep.subr.mxu0 0.0
        %2746 = vmatpush1.msra.mxu0 %v2237
        %2747 = vmatprep.subr.mxu0 0.0
        %2748 = vmatpush1.msra.mxu0 %v2238
        %2749 = vmatprep.subr.mxu0 0.0
        %2750 = vmatpush1.msra.mxu0 %v2239
        %2751 = vmatprep.subr.mxu0 0.0
        %2752 = vmatpush1.msra.mxu0 %v2240
        %2753 = vmatprep.subr.mxu0 0.0
        %2754 = vmatpush1.msra.mxu0 %v2241
        %2755 = vmatprep.subr.mxu0 0.0
        %2756 = vmatpush1.msra.mxu0 %v2242
        %2757 = vmatprep.subr.mxu0 0.0
        %2758 = vmatpush1.msra.mxu0 %v2243
        %2759 = vmatprep.subr.mxu0 0.0
        %2760 = vmatpush1.msra.mxu0 %v2244
        %2761 = vmatprep.subr.mxu0 0.0
        %2762 = vmatpush1.msra.mxu0 %v2245
        %2763 = vmatprep.subr.mxu0 0.0
        %2764 = vmatpush1.msra.mxu0 %v2246
        %2765 = vmatprep.subr.mxu0 0.0
        %2766 = vmatpush1.msra.mxu0 %v2247
        %2767 = vmatprep.subr.mxu0 0.0
        %2768 = vmatpush1.msra.mxu0 %v2248
        %2769 = vmatprep.subr.mxu0 0.0
        %2770 = vmatpush1.msra.mxu0 %v2249
        %2771 = vmatprep.subr.mxu0 0.0
        %2772 = vmatpush1.msra.mxu0 %v2250
        %2773 = vmatprep.subr.mxu0 0.0
        %2774 = vmatpush1.msra.mxu0 %v2251
        %2775 = vmatprep.subr.mxu0 0.0
        %2776 = vmatpush1.msra.mxu0 %v2252
        %2777 = vmatprep.subr.mxu0 0.0
        %2778 = vmatpush1.msra.mxu0 %v2253
        %2779 = vmatprep.subr.mxu0 0.0
        %2780 = vmatpush1.msra.mxu0 %v2254
        %2781 = vmatprep.subr.mxu0 0.0
        %2782 = vmatpush1.msra.mxu0 %v2255
        %2783 = vmatprep.subr.mxu0 0.0
        %2784 = vmatpush1.msra.mxu0 %v2256
        %2785 = vmatprep.subr.mxu0 0.0
        %2786 = vmatpush1.msra.mxu0 %v2257
        %2787 = vmatprep.subr.mxu0 0.0
        %2788 = vmatpush1.msra.mxu0 %v2258
        %2789 = vmatprep.subr.mxu0 0.0
        %2790 = vmatpush1.msra.mxu0 %v2259
        %2791 = vmatprep.subr.mxu0 0.0
        %2792 = vmatpush1.msra.mxu0 %v2260
        %2793 = vmatprep.mubr.f32.mxu0 %v2306
        %2794 = vmatmul.mubr.f32.gmra.mrb[0].mxu0 %v2305
        %v2795 = vpop.f32.mrb[0].mxu0
        %v2796 = vadd.f32 %v2726, %v2795
        %v2797 = vpop.f32.mrb[0].mxu0
        %2798 = vdwg.mxu0
        %2799 = vmatprep.subr.mxu0 0.0
        %2800 = vmatpush1.msra.mxu0 %v2261
        %2801 = vmatprep.subr.mxu0 0.0
        %2802 = vmatpush1.msra.mxu0 %v2262
        %2803 = vmatprep.subr.mxu0 0.0
        %2804 = vmatpush1.msra.mxu0 %v2263
        %2805 = vmatprep.subr.mxu0 0.0
        %2806 = vmatpush1.msra.mxu0 %v2264
        %2807 = vmatprep.subr.mxu0 0.0
        %2808 = vmatpush1.msra.mxu0 %v2265
        %2809 = vmatprep.subr.mxu0 0.0
        %2810 = vmatpush1.msra.mxu0 %v2266
        %2811 = vmatprep.subr.mxu0 0.0
        %2812 = vmatpush1.msra.mxu0 %v2267
        %2813 = vmatprep.subr.mxu0 0.0
        %2814 = vmatpush1.msra.mxu0 %v2268
        %2815 = vmatprep.subr.mxu0 0.0
        %2816 = vmatpush1.msra.mxu0 %v2269
        %2817 = vmatprep.subr.mxu0 0.0
        %2818 = vmatpush1.msra.mxu0 %v2270
        %2819 = vmatprep.subr.mxu0 0.0
        %2820 = vmatpush1.msra.mxu0 %v2271
        %2821 = vmatprep.subr.mxu0 0.0
        %2822 = vmatpush1.msra.mxu0 %v2272
        %2823 = vmatprep.subr.mxu0 0.0
        %2824 = vmatpush1.msra.mxu0 %v2273
        %2825 = vmatprep.subr.mxu0 0.0
        %2826 = vmatpush1.msra.mxu0 %v2274
        %2827 = vmatprep.subr.mxu0 0.0
        %2828 = vmatpush1.msra.mxu0 %v2275
        %2829 = vmatprep.subr.mxu0 0.0
        %2830 = vmatpush1.msra.mxu0 %v2276
        %2831 = vmatprep.subr.mxu0 0.0
        %2832 = vmatpush1.msra.mxu0 %v2277
        %2833 = vmatprep.subr.mxu0 0.0
        %2834 = vmatpush1.msra.mxu0 %v2278
        %2835 = vmatprep.subr.mxu0 0.0
        %2836 = vmatpush1.msra.mxu0 %v2279
        %2837 = vmatprep.subr.mxu0 0.0
        %2838 = vmatpush1.msra.mxu0 %v2280
        %2839 = vmatprep.subr.mxu0 0.0
        %2840 = vmatpush1.msra.mxu0 %v2281
        %2841 = vmatprep.subr.mxu0 0.0
        %2842 = vmatpush1.msra.mxu0 %v2282
        %2843 = vmatprep.subr.mxu0 0.0
        %2844 = vmatpush1.msra.mxu0 %v2283
        %2845 = vmatprep.subr.mxu0 0.0
        %2846 = vmatpush1.msra.mxu0 %v2284
        %2847 = vmatprep.subr.mxu0 0.0
        %2848 = vmatpush1.msra.mxu0 %v2285
        %2849 = vmatprep.subr.mxu0 0.0
        %2850 = vmatpush1.msra.mxu0 %v2286
        %2851 = vmatprep.subr.mxu0 0.0
        %2852 = vmatpush1.msra.mxu0 %v2287
        %2853 = vmatprep.subr.mxu0 0.0
        %2854 = vmatpush1.msra.mxu0 %v2288
        %2855 = vmatprep.subr.mxu0 0.0
        %2856 = vmatpush1.msra.mxu0 %v2289
        %2857 = vmatprep.subr.mxu0 0.0
        %2858 = vmatpush1.msra.mxu0 %v2290
        %2859 = vmatprep.subr.mxu0 0.0
        %2860 = vmatpush1.msra.mxu0 %v2291
        %2861 = vmatprep.subr.mxu0 0.0
        %2862 = vmatpush1.msra.mxu0 %v2292
        %2863 = vmatprep.mubr.f32.mxu0 %v2308
        %2864 = vmatmul.mubr.f32.gmra.mrb[0].mxu0 %v2307
        %v2865 = vpop.f32.mrb[0].mxu0
        %v2866 = vadd.f32 %v2796, %v2865
        %v2867 = vpop.f32.mrb[0].mxu0
        %2868 = vdwg.mxu0
        %2869 = vst [vmem:[%s191] sm:$0xff] %v2866
        %s2870 = sand.u32 %s115, 1
        %s2871 = scalar_lea.sflag [#allocation3], %s2870
        %s2872 = sand.u32 %s115, 1
        %s2873 = smul.addr %s2872, 8
        %s2874 = scalar_lea.vmem [#allocation2], %s2873
        // Predicated region
        $region37: #{tpu_custom_call.1} parent=35 // pred_check
          %p2875 = pneg %p125
        $region38: #{tpu_custom_call.1} parent=35 // pred_check_branch
          %2877 = sbr.rel (%p2875) target = $region40
        $region39: #{tpu_custom_call.1} parent=35 // pred_region
          %s2879 = ssub.s32 128, 128
          %2880 = vsyncadd %s2871, %s2879
          %s2881 = smul.addr %s18, 128
          %s2882 = scalar_lea.hbm %s4, %s2881
          %s2884 = sshll.u32 %s2874, 4
          %s2885 = int_to_ptr.vmem [resolvable:$true] %s2884
          %2887 = dma.vmem_to_hbm [thread:$0]  %s2885, 128, %s2882, %s2871
        $region40: #{tpu_custom_call.1} parent=35 // pred_fallthru
          _
      $region36: #{tpu_custom_call.1} parent=5 // pred_fallthru
        _
      %p2888 = scmp.le.s32.totalorder 2, %s13
      // Predicated region
      $region41: #{tpu_custom_call.1} parent=5 // pred_check
        %p2889 = pneg %p2888
      $region42: #{tpu_custom_call.1} parent=5 // pred_check_branch
        %2891 = sbr.rel (%p2889) target = $region44
      $region43: #{tpu_custom_call.1} parent=5 // pred_region
        %s2892 = ssub.s32 %s13, 2
        // Predicated region
        $region45: #{tpu_custom_call.1} parent=43 // pred_check
          %p2893 = pneg %p131
        $region46: #{tpu_custom_call.1} parent=43 // pred_check_branch
          %2895 = sbr.rel (%p2893) target = $region48
        $region47: #{tpu_custom_call.1} parent=43 // pred_region
          %s2896 = sand.u32 %s116, 1
          %s2897 = scalar_lea.sflag [#allocation3], %s2896
          %s2898 = sand.u32 %s116, 1
          %s2899 = smul.addr %s2898, 8
          %s2900 = scalar_lea.vmem [#allocation2], %s2899
          %2901 = dma.done %s2897, 128
        $region48: #{tpu_custom_call.1} parent=43 // pred_fallthru
          _
      $region44: #{tpu_custom_call.1} parent=5 // pred_fallthru
        _
    $region6: #{tpu_custom_call.1} parent=1 // loop_footer
      %s17 = sadd.s32 1, %s13
    $region7: #{tpu_custom_call.1} parent=1 // loop_footer_branch
      %12 = sbr.rel target = $region3
    $region8: #{tpu_custom_call.1} parent=1 // loop_exit
      _
    %2902 = vsyncpa [#allocation3], 1
    %s2903 = scalar_lea.sflag [#allocation3], 1
    %2904 = vsyncpa %s2903, 1

</llo_original>
